<compile_context>
chip_gen: v7x
topology: tpu7x:2x2x1
jax: 0.10.0
libtpu: 0.0.40
codegen_flags: <defaults>
</compile_context>

<pallas_src>
import functools
import math

import jax
import jax.numpy as jnp
from jax.experimental import pallas as pl
from jax.experimental.pallas import tpu as pltpu

LANE = 128
SUBLANE = 8


def _round_up(x, m):
    return ((x + m - 1) // m) * m


def _cdiv(a, b):
    return -(-a // b)


def _pad_to(a, shape):
    pads = [(0, t - s) for s, t in zip(a.shape, shape)]
    if all(p == (0, 0) for p in pads):
        return a
    return jnp.pad(a, pads)


def _vmem_limit(*nbytes):
    # explicit scoped-VMEM request: 2x headroom + 4 MiB, clamped to a budget
    # that is safe on v5e/v6e (128 MiB) and v7x (64 MiB physical).
    need = 2 * sum(int(n) for n in nbytes) + (4 << 20)
    return int(min(max(need, 32 << 20), 48 << 20))


# ----------------------------------------------------------------------------
# Kernel 1: 1x1-conv backbone stand-in + GeM pooling, streaming x over HW tiles
# ----------------------------------------------------------------------------
def gem_pool_kernel(p_ref, x_ref, wconvT_ref, pooled_ref, acc_ref, *,
                    hw_total, thw, static_p, use_mxu, eps=1e-6):
    s = pl.program_id(1)
    n_s = pl.num_programs(1)

    @pl.when(s == 0)
    def _init():
        acc_ref[...] = jnp.zeros_like(acc_ref)

    x2 = x_ref[0]                                    # [Cin, thw] f32, lanes = HW
    cin = x2.shape[0]

    # --- backbone stand-in: pointwise (1x1) conv on this HW tile -------------
    # TODO(synk): the timm 'gluon_seresnext101_32x4d' pretrained backbone has no
    # clean in-script equivalent; replaced by a deterministic 1x1 conv.
    if use_mxu:
        feat = jnp.dot(wconvT_ref[...].astype(jnp.bfloat16),
                       x2.astype(jnp.bfloat16),
                       preferred_element_type=jnp.float32)       # [cf_p, thw]
    else:
        # thin-channel input: Cin broadcast-FMAs on the VPU (no near-empty MXU
        # pass, no channel padding of the streamed activation).
        w = wconvT_ref[...]                                      # [cf_p, Cin]
        feat = w[:, 0:1] * x2[0:1, :]
        for c in range(1, cin):
            feat = feat + w[:, c:c + 1] * x2[c:c + 1, :]

    # --- GeM partial sum over HW: clamp(relu(feat), eps)^p -------------------
    # (the ReLU is subsumed by the eps clamp since eps > 0)
    clamped = jnp.maximum(feat, eps)
    if static_p is not None and float(static_p).is_integer() and static_p >= 1:
        fp = clamped                            # integer p: VPU multiplies only
        for _ in range(int(static_p) - 1):
            fp = fp * clamped
    elif static_p is not None:
        fp = jnp.power(clamped, jnp.float32(static_p))
    else:
        fp = jnp.power(clamped, p_ref[0, 0])    # runtime (learnable) p

    if hw_total % thw != 0:                     # mask the padded HW tail
        t = jax.lax.broadcasted_iota(jnp.int32, fp.shape, 1)
        fp = jnp.where(s * thw + t < hw_total, fp, 0.0)

    acc_ref[...] += jnp.sum(fp, axis=-1, keepdims=True)          # [cf_p, 1]

    # --- finalize on the last HW step: (mean_hw)^(1/p) ------------------------
    @pl.when(s == n_s - 1)
    def _finalize():
        mean = acc_ref[...] * (1.0 / hw_total)
        inv_p = (1.0 / float(static_p)) if static_p is not None \
            else 1.0 / p_ref[0, 0]
        pooled_ref[...] = jnp.power(mean, inv_p)[None]           # [1, cf_p, 1]


# ----------------------------------------------------------------------------
# Kernel 2: feat Linear + Swish + L2-normalize + subcenter cosine,
#           grid-tiled over the class dimension (wmet streams per tile).
# ----------------------------------------------------------------------------
def head_kernel(pooled_ref, wfeat_ref, bfeat_ref, wmet_ref, cos_ref, emb_ref,
                emb_sc, *, k_centers):
    j = pl.program_id(0)

    @pl.when(j == 0)
    def _embed():
        pooled = pooled_ref[...].astype(jnp.bfloat16)            # [B, cf_p]
        z = jnp.dot(pooled, wfeat_ref[...],
                    preferred_element_type=jnp.float32) + bfeat_ref[...]
        emb = z * (1.0 / (1.0 + jnp.exp(-z)))                    # swish (exact)
        ssq = jnp.sum(emb * emb, axis=-1, keepdims=True)
        emb_n = emb * jax.lax.rsqrt(jnp.maximum(ssq, 1e-24))     # F.normalize
        emb_ref[...] = emb_n
        emb_sc[...] = emb_n.astype(jnp.bfloat16)

    e = emb_sc[...]                                              # [B, e_p] bf16
    cos = jnp.dot(e, wmet_ref[0], preferred_element_type=jnp.float32)
    for k in range(1, k_centers):                                # max over K
        cos = jnp.maximum(
            cos, jnp.dot(e, wmet_ref[k], preferred_element_type=jnp.float32))
    cos_ref[...] = cos


# ----------------------------------------------------------------------------
# One-time weight preparation (hoisted out of the per-call forward)
# ----------------------------------------------------------------------------
def prepare_params(params, *, max_out_tile=4096):
    wconv = params["wconv"]                      # [Cin, Cf]
    wfeat = params["wfeat"]                      # [Cf, E]
    bfeat = params["bfeat"]                      # [1, E]
    wmet = params["wmet"]                        # [K, OUT, E]
    cin, cf = wconv.shape
    e = wfeat.shape[1]
    k, out_dim, _ = wmet.shape

    cf_p = _round_up(cf, LANE)
    e_p = _round_up(e, LANE)
    t_out = min(_round_up(out_dim, LANE), max_out_tile)
    out_pad = _round_up(out_dim, t_out)

    # conv weight transposed to [Cf_pad, Cin] so the kernel consumes x in its
    # native [Cin, HW] layout (no activation transpose / channel padding).
    wconvT = _pad_to(jnp.transpose(wconv, (1, 0)), (cf_p, cin)).astype(jnp.float32)
    wfeat_p = _pad_to(wfeat, (cf_p, e_p)).astype(jnp.bfloat16)
    bfeat_p = _pad_to(bfeat, (1, e_p)).astype(jnp.float32)

    # hoisted subcenter-weight L2 normalization, packed as [K, E_pad, OUT_pad]
    # so each class tile is a contiguous lane-aligned [E_pad, t_out] slab.
    wn = wmet / jnp.maximum(jnp.linalg.norm(wmet, axis=-1, keepdims=True), 1e-12)
    wmet_pack = _pad_to(jnp.transpose(wn, (0, 2, 1)), (k, e_p, out_pad))
    wmet_pack = wmet_pack.astype(jnp.bfloat16)

    return dict(p_gem=params["p_gem"].astype(jnp.float32).reshape(1, 1),
                wconvT=wconvT, wfeat=wfeat_p, bfeat=bfeat_p, wmet=wmet_pack)


# ----------------------------------------------------------------------------
# Forward wrapper
# ----------------------------------------------------------------------------
@functools.partial(jax.jit,
                   static_argnames=("out_dim", "emb_size", "static_p", "tile_hw"))
def effnet_landmark(x, prep, *, out_dim, emb_size, static_p=None, tile_hw=512):
    B, Cin, H, W = x.shape
    HW = H * W

    wconvT = prep["wconvT"]
    wfeat = prep["wfeat"]
    bfeat = prep["bfeat"]
    wmet = prep["wmet"]
    p_gem = prep["p_gem"]
    cf_p = wconvT.shape[0]
    e_p = wfeat.shape[1]
    K, _, out_pad = wmet.shape
    t_out = min(out_pad, 4096)
    assert out_pad % t_out == 0
    n_out = out_pad // t_out

    # ------------------ kernel 1: 1x1-conv + GeM over HW ---------------------
    thw = max(LANE, min(_round_up(tile_hw, LANE), _round_up(HW, LANE)))
    n_hw = _cdiv(HW, thw)
    x3 = x.reshape(B, Cin, HW)            # free reshape of NCHW; NO transpose

    smem = pl.BlockSpec(memory_space=pltpu.MemorySpace.SMEM)
    use_mxu = (Cin >= 16) and (Cin % SUBLANE == 0)

    gem = functools.partial(gem_pool_kernel, hw_total=HW, thw=thw,
                            static_p=static_p, use_mxu=use_mxu)
    vmem1 = _vmem_limit(
        2 * SUBLANE * thw * 4,            # x tile (double-buffered, sublane pad)
        2 * cf_p * LANE * 4,              # wconvT (lane-padded in VMEM)
        cf_p * LANE * 4,                  # GeM accumulator scratch
        3 * cf_p * thw * 4)               # feat / fp temporaries

    pooled3 = pl.pallas_call(
        gem,
        out_shape=jax.ShapeDtypeStruct((B, cf_p, 1), jnp.float32),
        grid_spec=pltpu.PrefetchScalarGridSpec(
            num_scalar_prefetch=0,
            grid=(B, n_hw),               # (batch ["parallel"], HW ["arbitrary"])
            in_specs=[
                smem,                                                   # GeM p
                pl.BlockSpec((1, Cin, thw), lambda b, s: (b, 0, s)),    # x tile
                pl.BlockSpec((cf_p, Cin), lambda b, s: (0, 0)),         # wconvT
            ],
            out_specs=pl.BlockSpec((1, cf_p, 1), lambda b, s: (b, 0, 0)),
            scratch_shapes=[pltpu.VMEM((cf_p, 1), jnp.float32)]),
        compiler_params=pltpu.CompilerParams(
            dimension_semantics=("parallel", "arbitrary"),
            vmem_limit_bytes=vmem1),
    )(p_gem, x3, wconvT)
    pooled = pooled3.reshape(B, cf_p)     # tiny, layout-preserving

    # ------------------ kernel 2: head, tiled over classes -------------------
    head = functools.partial(head_kernel, k_centers=K)
    vmem2 = _vmem_limit(
        2 * max(B, SUBLANE) * cf_p * 4,                 # pooled
        2 * cf_p * e_p * 2,                             # wfeat (bf16)
        2 * K * e_p * t_out * 2,                        # wmet tile (bf16)
        2 * max(B, SUBLANE) * (t_out + 2 * e_p) * 4)    # outputs + scratch

    cos_pad, emb_pad = pl.pallas_call(
        head,
        out_shape=(jax.ShapeDtypeStruct((B, out_pad), jnp.float32),
                   jax.ShapeDtypeStruct((B, e_p), jnp.float32)),
        grid_spec=pltpu.PrefetchScalarGridSpec(
            num_scalar_prefetch=0,
            grid=(n_out,),
            in_specs=[
                pl.BlockSpec((B, cf_p), lambda j: (0, 0)),              # pooled
                pl.BlockSpec((cf_p, e_p), lambda j: (0, 0)),            # wfeat
                pl.BlockSpec((1, e_p), lambda j: (0, 0)),               # bfeat
                pl.BlockSpec((K, e_p, t_out), lambda j: (0, 0, j)),     # wmet
            ],
            out_specs=(
                pl.BlockSpec((B, t_out), lambda j: (0, j)),             # cosine
                pl.BlockSpec((B, e_p), lambda j: (0, 0)),               # emb
            ),
            scratch_shapes=[pltpu.VMEM((B, e_p), jnp.bfloat16)]),
        compiler_params=pltpu.CompilerParams(
            dimension_semantics=("arbitrary",),
            vmem_limit_bytes=vmem2),
    )(pooled, wfeat, bfeat, wmet)

    return cos_pad[:, :out_dim], emb_pad[:, :emb_size]


# ----------------------------------------------------------------------------
# Deterministic parameter init (mirrors the PyTorch __init__ shapes / inits)
# ----------------------------------------------------------------------------
def init_params(key, cin, cf, emb_size, out_dim, k):
    k1, k2, k3, k4 = jax.random.split(key, 4)
    wconv = 0.1 * jax.random.normal(k1, (cin, cf), jnp.float32)  # backbone stand-in
    p_gem = jnp.full((1, 1), 3.0, jnp.float32)                   # GeM p init = 3
    lim = 1.0 / math.sqrt(cf)
    wfeat = jax.random.uniform(k2, (cf, emb_size), jnp.float32, -lim, lim)
    bfeat = jax.random.uniform(k3, (1, emb_size), jnp.float32, -lim, lim)
    stdv = 1.0 / math.sqrt(emb_size)
    w = jax.random.uniform(k4, (out_dim * k, emb_size), jnp.float32, -stdv, stdv)
    # torch view(-1, out_dim, k): row index = o*k + j  ->  reorder to [k, out, E]
    wmet = jnp.transpose(w.reshape(out_dim, k, emb_size), (1, 0, 2))
    return dict(wconv=wconv, p_gem=p_gem, wfeat=wfeat, bfeat=bfeat, wmet=wmet)


# ----------------------------------------------------------------------------
# Pure-JAX reference for verification
# ----------------------------------------------------------------------------
def reference(x_nchw, params):
    B, Cin, H, W = x_nchw.shape
    x3 = jnp.transpose(x_nchw, (0, 2, 3, 1)).reshape(B, H * W, Cin)
    feat = jnp.maximum(jnp.einsum("bsc,cf->bsf", x3, params["wconv"]), 0.0)
    p = params["p_gem"][0, 0]
    pooled = jnp.mean(jnp.maximum(feat, 1e-6) ** p, axis=1) ** (1.0 / p)
    z = pooled @ params["wfeat"] + params["bfeat"]
    emb = z * jax.nn.sigmoid(z)
    emb_n = emb / jnp.maximum(
        jnp.linalg.norm(emb, axis=-1, keepdims=True), 1e-12)
    wmet = params["wmet"]
    wn = wmet / jnp.maximum(
        jnp.linalg.norm(wmet, axis=-1, keepdims=True), 1e-12)
    cos_all = jnp.einsum("be,koe->bko", emb_n, wn)
    return jnp.max(cos_all, axis=1), emb_n


if __name__ == "__main__":
    # small shapes consistent with the forward pass
    B, Cin, H, W = 2, 4, 16, 16
    Cf = 32           # stand-in for feature_extractor.classifier.in_features
    EMB = 32          # stand-in for CFG.EMBEDDING_SIZE
    OUT_DIM = 16      # number of classes
    K = 3             # CFG.CENTERS_PER_CLASS

    key = jax.random.PRNGKey(0)
    kx, kp = jax.random.split(key)
    x = jax.random.normal(kx, (B, Cin, H, W), jnp.float32)
    params = init_params(kp, Cin, Cf, EMB, OUT_DIM, K)

    prep = prepare_params(params)    # one-time weight prep (outside the forward)
    cosine, emb_n = effnet_landmark(x, prep, out_dim=OUT_DIM, emb_size=EMB,
                                    static_p=3.0, tile_hw=128)
    jax.block_until_ready((cosine, emb_n))

    cos_ref, emb_ref = reference(x, params)
    assert cosine.shape == (B, OUT_DIM) and emb_n.shape == (B, EMB)
    assert jnp.allclose(cosine, cos_ref, rtol=3e-2, atol=3e-2), (
        "cosine mismatch", float(jnp.max(jnp.abs(cosine - cos_ref))))
    assert jnp.allclose(emb_n, emb_ref, rtol=3e-2, atol=3e-2), (
        "embedding mismatch", float(jnp.max(jnp.abs(emb_n - emb_ref))))

    print("KERNEL_OK")
</pallas_src>

<mosaic_0001>
module attributes {stable_mosaic.version = 11 : i64} {
  func.func @gem_pool_kernel(%arg0: i32, %arg1: i32, %arg2: memref<1x1xf32, #tpu.memory_space<smem>>, %arg3: memref<1x4x128xf32, #tpu.memory_space<vmem>>, %arg4: memref<128x4xf32, #tpu.memory_space<vmem>>, %arg5: memref<1x128x1xf32, #tpu.memory_space<vmem>>, %arg6: memref<128x1xf32, #tpu.memory_space<vmem>>) attributes {dimension_semantics = [#tpu.dimension_semantics<parallel>, #tpu.dimension_semantics<arbitrary>], iteration_bounds = array<i64: 2, 2>, scalar_prefetch = 0 : i64, scratch_operands = 1 : i64, tpu.core_type = #tpu.core_type<tc>, window_params = [{transform_indices = @transform_0, window_bounds = array<i64: 1, 1>}, {transform_indices = @transform_1, window_bounds = array<i64: 1, 4, 128>}, {pipeline_mode = #tpu.pipeline_mode<synchronous>, transform_indices = @transform_2, window_bounds = array<i64: 128, 4>}, {transform_indices = @transform_3, window_bounds = array<i64: 1, 128, 1>}]} {
    %c0_i32 = arith.constant 0 : i32
    %0 = arith.cmpi eq, %arg1, %c0_i32 : i32
    %1 = arith.extui %0 : i1 to i32
    %c0_i32_0 = arith.constant 0 : i32
    %2 = arith.cmpi ne, %1, %c0_i32_0 : i32
    scf.if %2 {
      %cst_11 = arith.constant 0.000000e+00 : f32
      %41 = vector.broadcast %cst_11 : f32 to vector<128x1xf32>
      %c0_12 = arith.constant 0 : index
      %c0_13 = arith.constant 0 : index
      %42 = vector.load %arg6[%c0_12, %c0_13] : memref<128x1xf32, #tpu.memory_space<vmem>>, vector<128x1xf32>
      tpu.vector_store %arg6[%c0_12, %c0_13], %41 {strides = array<i32>} : memref<128x1xf32, #tpu.memory_space<vmem>>, vector<128x1xf32>,
    } else {
    }
    %c0 = arith.constant 0 : index
    %c0_1 = arith.constant 0 : index
    %c0_2 = arith.constant 0 : index
    %3 = vector.load %arg3[%c0, %c0_1, %c0_2] : memref<1x4x128xf32, #tpu.memory_space<vmem>>, vector<1x4x128xf32>
    %4 = vector.shape_cast %3 : vector<1x4x128xf32> to vector<4x128xf32>
    %c0_3 = arith.constant 0 : index
    %c0_4 = arith.constant 0 : index
    %5 = vector.load %arg4[%c0_3, %c0_4] : memref<128x4xf32, #tpu.memory_space<vmem>>, vector<128x4xf32>
    %6 = vector.extract_strided_slice %5 {offsets = [0, 0], sizes = [128, 1], strides = [1, 1]} : vector<128x4xf32> to vector<128x1xf32>
    %7 = vector.extract_strided_slice %4 {offsets = [0, 0], sizes = [1, 128], strides = [1, 1]} : vector<4x128xf32> to vector<1x128xf32>
    %8 = vector.broadcast %6 : vector<128x1xf32> to vector<128x128xf32>
    %9 = vector.broadcast %7 : vector<1x128xf32> to vector<128x128xf32>
    %10 = arith.mulf %8, %9 : vector<128x128xf32>
    %11 = vector.extract_strided_slice %5 {offsets = [0, 1], sizes = [128, 1], strides = [1, 1]} : vector<128x4xf32> to vector<128x1xf32>
    %12 = vector.extract_strided_slice %4 {offsets = [1, 0], sizes = [1, 128], strides = [1, 1]} : vector<4x128xf32> to vector<1x128xf32>
    %13 = vector.broadcast %11 : vector<128x1xf32> to vector<128x128xf32>
    %14 = vector.broadcast %12 : vector<1x128xf32> to vector<128x128xf32>
    %15 = arith.mulf %13, %14 : vector<128x128xf32>
    %16 = arith.addf %10, %15 : vector<128x128xf32>
    %17 = vector.extract_strided_slice %5 {offsets = [0, 2], sizes = [128, 1], strides = [1, 1]} : vector<128x4xf32> to vector<128x1xf32>
    %18 = vector.extract_strided_slice %4 {offsets = [2, 0], sizes = [1, 128], strides = [1, 1]} : vector<4x128xf32> to vector<1x128xf32>
    %19 = vector.broadcast %17 : vector<128x1xf32> to vector<128x128xf32>
    %20 = vector.broadcast %18 : vector<1x128xf32> to vector<128x128xf32>
    %21 = arith.mulf %19, %20 : vector<128x128xf32>
    %22 = arith.addf %16, %21 : vector<128x128xf32>
    %23 = vector.extract_strided_slice %5 {offsets = [0, 3], sizes = [128, 1], strides = [1, 1]} : vector<128x4xf32> to vector<128x1xf32>
    %24 = vector.extract_strided_slice %4 {offsets = [3, 0], sizes = [1, 128], strides = [1, 1]} : vector<4x128xf32> to vector<1x128xf32>
    %25 = vector.broadcast %23 : vector<128x1xf32> to vector<128x128xf32>
    %26 = vector.broadcast %24 : vector<1x128xf32> to vector<128x128xf32>
    %27 = arith.mulf %25, %26 : vector<128x128xf32>
    %28 = arith.addf %22, %27 : vector<128x128xf32>
    %cst = arith.constant 9.99999997E-7 : f32
    %29 = vector.broadcast %cst : f32 to vector<128x128xf32>
    %30 = arith.maximumf %28, %29 : vector<128x128xf32>
    %31 = arith.mulf %30, %30 : vector<128x128xf32>
    %32 = arith.mulf %31, %30 : vector<128x128xf32>
    %c0_5 = arith.constant 0 : index
    %c0_6 = arith.constant 0 : index
    %33 = vector.load %arg6[%c0_5, %c0_6] : memref<128x1xf32, #tpu.memory_space<vmem>>, vector<128x1xf32>
    %cst_7 = arith.constant dense<0.000000e+00> : vector<128xf32>
    %34 = vector.multi_reduction <add>, %32, %cst_7 [1] : vector<128x128xf32> to vector<128xf32>
    %35 = vector.shape_cast %34 : vector<128xf32> to vector<128x1xf32>
    %36 = arith.addf %33, %35 : vector<128x1xf32>
    %c0_8 = arith.constant 0 : index
    %c0_9 = arith.constant 0 : index
    %37 = vector.load %arg6[%c0_8, %c0_9] : memref<128x1xf32, #tpu.memory_space<vmem>>, vector<128x1xf32>
    tpu.vector_store %arg6[%c0_8, %c0_9], %36 {strides = array<i32>} : memref<128x1xf32, #tpu.memory_space<vmem>>, vector<128x1xf32>,
    %c1_i32 = arith.constant 1 : i32
    %38 = arith.cmpi eq, %arg1, %c1_i32 : i32
    %39 = arith.extui %38 : i1 to i32
    %c0_i32_10 = arith.constant 0 : i32
    %40 = arith.cmpi ne, %39, %c0_i32_10 : i32
    scf.if %40 {
      %c0_11 = arith.constant 0 : index
      %c0_12 = arith.constant 0 : index
      %41 = vector.load %arg6[%c0_11, %c0_12] : memref<128x1xf32, #tpu.memory_space<vmem>>, vector<128x1xf32>
      %cst_13 = arith.constant 3.906250e-03 : f32
      %42 = vector.broadcast %cst_13 : f32 to vector<128x1xf32>
      %43 = arith.mulf %41, %42 : vector<128x1xf32>
      %cst_14 = arith.constant 0.333333343 : f32
      %44 = vector.broadcast %cst_14 : f32 to vector<128x1xf32>
      %45 = math.powf %43, %44 : vector<128x1xf32>
      %46 = vector.shape_cast %45 : vector<128x1xf32> to vector<1x128x1xf32>
      %c0_15 = arith.constant 0 : index
      %c0_16 = arith.constant 0 : index
      %c0_17 = arith.constant 0 : index
      %47 = vector.load %arg5[%c0_15, %c0_16, %c0_17] : memref<1x128x1xf32, #tpu.memory_space<vmem>>, vector<1x128x1xf32>
      tpu.vector_store %arg5[%c0_15, %c0_16, %c0_17], %46 {strides = array<i32>} : memref<1x128x1xf32, #tpu.memory_space<vmem>>, vector<1x128x1xf32>,
    } else {
    }
    return
  }
  func.func @transform_0(%arg0: i32, %arg1: i32) -> (i32, i32) {
    %c0_i32 = arith.constant 0 : i32
    %c0_i32_0 = arith.constant 0 : i32
    %c0_i32_1 = arith.constant 0 : i32
    return %c0_i32, %c0_i32_0 : i32, i32
  }
  func.func @transform_1(%arg0: i32, %arg1: i32) -> (i32, i32, i32) {
    %c0_i32 = arith.constant 0 : i32
    %c0_i32_0 = arith.constant 0 : i32
    return %arg0, %c0_i32, %arg1 : i32, i32, i32
  }
  func.func @transform_2(%arg0: i32, %arg1: i32) -> (i32, i32) {
    %c0_i32 = arith.constant 0 : i32
    %c0_i32_0 = arith.constant 0 : i32
    %c0_i32_1 = arith.constant 0 : i32
    return %c0_i32, %c0_i32_0 : i32, i32
  }
  func.func @transform_3(%arg0: i32, %arg1: i32) -> (i32, i32, i32) {
    %c0_i32 = arith.constant 0 : i32
    %c0_i32_0 = arith.constant 0 : i32
    %c0_i32_1 = arith.constant 0 : i32
    return %arg0, %c0_i32, %c0_i32_0 : i32, i32, i32
  }
}

module attributes {stable_mosaic.version = 11 : i64} {
  func.func @head_kernel(%arg0: i32, %arg1: memref<2x128xf32, #tpu.memory_space<vmem>>, %arg2: memref<128x128xbf16, #tpu.memory_space<vmem>>, %arg3: memref<1x128xf32, #tpu.memory_space<vmem>>, %arg4: memref<3x128x128xbf16, #tpu.memory_space<vmem>>, %arg5: memref<2x128xf32, #tpu.memory_space<vmem>>, %arg6: memref<2x128xf32, #tpu.memory_space<vmem>>, %arg7: memref<2x128xbf16, #tpu.memory_space<vmem>>) attributes {dimension_semantics = [#tpu.dimension_semantics<arbitrary>], iteration_bounds = array<i64: 1>, scalar_prefetch = 0 : i64, scratch_operands = 1 : i64, tpu.core_type = #tpu.core_type<tc>, window_params = [{pipeline_mode = #tpu.pipeline_mode<synchronous>, transform_indices = @transform_0, window_bounds = array<i64: 2, 128>}, {pipeline_mode = #tpu.pipeline_mode<synchronous>, transform_indices = @transform_1, window_bounds = array<i64: 128, 128>}, {pipeline_mode = #tpu.pipeline_mode<synchronous>, transform_indices = @transform_2, window_bounds = array<i64: 1, 128>}, {transform_indices = @transform_3, window_bounds = array<i64: 3, 128, 128>}, {transform_indices = @transform_4, window_bounds = array<i64: 2, 128>}, {pipeline_mode = #tpu.pipeline_mode<synchronous>, transform_indices = @transform_5, window_bounds = array<i64: 2, 128>}]} {
    %c0_i32 = arith.constant 0 : i32
    %0 = arith.cmpi eq, %arg0, %c0_i32 : i32
    %1 = arith.extui %0 : i1 to i32
    %c0_i32_0 = arith.constant 0 : i32
    %2 = arith.cmpi ne, %1, %c0_i32_0 : i32
    scf.if %2 {
      %c0_13 = arith.constant 0 : index
      %c0_14 = arith.constant 0 : index
      %16 = vector.load %arg1[%c0_13, %c0_14] : memref<2x128xf32, #tpu.memory_space<vmem>>, vector<2x128xf32>
      %17 = arith.truncf %16 : vector<2x128xf32> to vector<2x128xbf16>
      %c0_15 = arith.constant 0 : index
      %c0_16 = arith.constant 0 : index
      %18 = vector.load %arg2[%c0_15, %c0_16] : memref<128x128xbf16, #tpu.memory_space<vmem>>, vector<128x128xbf16>
      %cst_17 = arith.constant dense<0.000000e+00> : vector<2x128xf32>
      %19 = tpu.matmul %17, %18, %cst_17 {dimension_numbers = #tpu.dot_dimension_numbers<[1], [0], [0], [1], [0, 0, 1, 1], [], []>} : vector<2x128xbf16>, vector<128x128xbf16>, vector<2x128xf32> -> vector<2x128xf32>
      %c0_18 = arith.constant 0 : index
      %c0_19 = arith.constant 0 : index
      %20 = vector.load %arg3[%c0_18, %c0_19] : memref<1x128xf32, #tpu.memory_space<vmem>>, vector<1x128xf32>
      %21 = vector.broadcast %20 : vector<1x128xf32> to vector<2x128xf32>
      %22 = arith.addf %19, %21 : vector<2x128xf32>
      %cst_20 = arith.constant 0.000000e+00 : f32
      %23 = vector.broadcast %cst_20 : f32 to vector<2x128xf32>
      %24 = arith.subf %23, %22 : vector<2x128xf32>
      %25 = math.exp %24 : vector<2x128xf32>
      %cst_21 = arith.constant 1.000000e+00 : f32
      %26 = vector.broadcast %cst_21 : f32 to vector<2x128xf32>
      %27 = arith.addf %26, %25 : vector<2x128xf32>
      %cst_22 = arith.constant 1.000000e+00 : f32
      %28 = vector.broadcast %cst_22 : f32 to vector<2x128xf32>
      %29 = arith.divf %28, %27 : vector<2x128xf32>
      %30 = arith.mulf %22, %29 : vector<2x128xf32>
      %31 = arith.mulf %30, %30 : vector<2x128xf32>
      %cst_23 = arith.constant dense<0.000000e+00> : vector<2xf32>
      %32 = vector.multi_reduction <add>, %31, %cst_23 [1] : vector<2x128xf32> to vector<2xf32>
      %33 = vector.shape_cast %32 : vector<2xf32> to vector<2x1xf32>
      %cst_24 = arith.constant 1.000000e-24 : f32
      %34 = vector.broadcast %cst_24 : f32 to vector<2x1xf32>
      %35 = arith.maximumf %33, %34 : vector<2x1xf32>
      %36 = math.rsqrt %35 : vector<2x1xf32>
      %37 = vector.broadcast %36 : vector<2x1xf32> to vector<2x128xf32>
      %38 = arith.mulf %30, %37 : vector<2x128xf32>
      %c0_25 = arith.constant 0 : index
      %c0_26 = arith.constant 0 : index
      %39 = vector.load %arg6[%c0_25, %c0_26] : memref<2x128xf32, #tpu.memory_space<vmem>>, vector<2x128xf32>
      tpu.vector_store %arg6[%c0_25, %c0_26], %38 {strides = array<i32>} : memref<2x128xf32, #tpu.memory_space<vmem>>, vector<2x128xf32>,
      %40 = arith.truncf %38 : vector<2x128xf32> to vector<2x128xbf16>
      %c0_27 = arith.constant 0 : index
      %c0_28 = arith.constant 0 : index
      %41 = vector.load %arg7[%c0_27, %c0_28] : memref<2x128xbf16, #tpu.memory_space<vmem>>, vector<2x128xbf16>
      tpu.vector_store %arg7[%c0_27, %c0_28], %40 {strides = array<i32>} : memref<2x128xbf16, #tpu.memory_space<vmem>>, vector<2x128xbf16>,
    } else {
    }
    %c0 = arith.constant 0 : index
    %c0_1 = arith.constant 0 : index
    %3 = vector.load %arg7[%c0, %c0_1] : memref<2x128xbf16, #tpu.memory_space<vmem>>, vector<2x128xbf16>
    %c0_2 = arith.constant 0 : index
    %c0_3 = arith.constant 0 : index
    %c0_4 = arith.constant 0 : index
    %4 = vector.load %arg4[%c0_2, %c0_3, %c0_4] : memref<3x128x128xbf16, #tpu.memory_space<vmem>>, vector<1x128x128xbf16>
    %5 = vector.shape_cast %4 : vector<1x128x128xbf16> to vector<128x128xbf16>
    %cst = arith.constant dense<0.000000e+00> : vector<2x128xf32>
    %6 = tpu.matmul %3, %5, %cst {dimension_numbers = #tpu.dot_dimension_numbers<[1], [0], [0], [1], [0, 0, 1, 1], [], []>} : vector<2x128xbf16>, vector<128x128xbf16>, vector<2x128xf32> -> vector<2x128xf32>
    %c1 = arith.constant 1 : index
    %c0_5 = arith.constant 0 : index
    %c0_6 = arith.constant 0 : index
    %7 = vector.load %arg4[%c1, %c0_5, %c0_6] : memref<3x128x128xbf16, #tpu.memory_space<vmem>>, vector<1x128x128xbf16>
    %8 = vector.shape_cast %7 : vector<1x128x128xbf16> to vector<128x128xbf16>
    %cst_7 = arith.constant dense<0.000000e+00> : vector<2x128xf32>
    %9 = tpu.matmul %3, %8, %cst_7 {dimension_numbers = #tpu.dot_dimension_numbers<[1], [0], [0], [1], [0, 0, 1, 1], [], []>} : vector<2x128xbf16>, vector<128x128xbf16>, vector<2x128xf32> -> vector<2x128xf32>
    %10 = arith.maximumf %6, %9 : vector<2x128xf32>
    %c2 = arith.constant 2 : index
    %c0_8 = arith.constant 0 : index
    %c0_9 = arith.constant 0 : index
    %11 = vector.load %arg4[%c2, %c0_8, %c0_9] : memref<3x128x128xbf16, #tpu.memory_space<vmem>>, vector<1x128x128xbf16>
    %12 = vector.shape_cast %11 : vector<1x128x128xbf16> to vector<128x128xbf16>
    %cst_10 = arith.constant dense<0.000000e+00> : vector<2x128xf32>
    %13 = tpu.matmul %3, %12, %cst_10 {dimension_numbers = #tpu.dot_dimension_numbers<[1], [0], [0], [1], [0, 0, 1, 1], [], []>} : vector<2x128xbf16>, vector<128x128xbf16>, vector<2x128xf32> -> vector<2x128xf32>
    %14 = arith.maximumf %10, %13 : vector<2x128xf32>
    %c0_11 = arith.constant 0 : index
    %c0_12 = arith.constant 0 : index
    %15 = vector.load %arg5[%c0_11, %c0_12] : memref<2x128xf32, #tpu.memory_space<vmem>>, vector<2x128xf32>
    tpu.vector_store %arg5[%c0_11, %c0_12], %14 {strides = array<i32>} : memref<2x128xf32, #tpu.memory_space<vmem>>, vector<2x128xf32>,
    return
  }
  func.func @transform_0(%arg0: i32) -> (i32, i32) {
    %c0_i32 = arith.constant 0 : i32
    %c0_i32_0 = arith.constant 0 : i32
    %c0_i32_1 = arith.constant 0 : i32
    return %c0_i32, %c0_i32_0 : i32, i32
  }
  func.func @transform_1(%arg0: i32) -> (i32, i32) {
    %c0_i32 = arith.constant 0 : i32
    %c0_i32_0 = arith.constant 0 : i32
    %c0_i32_1 = arith.constant 0 : i32
    return %c0_i32, %c0_i32_0 : i32, i32
  }
  func.func @transform_2(%arg0: i32) -> (i32, i32) {
    %c0_i32 = arith.constant 0 : i32
    %c0_i32_0 = arith.constant 0 : i32
    %c0_i32_1 = arith.constant 0 : i32
    return %c0_i32, %c0_i32_0 : i32, i32
  }
  func.func @transform_3(%arg0: i32) -> (i32, i32, i32) {
    %c0_i32 = arith.constant 0 : i32
    %c0_i32_0 = arith.constant 0 : i32
    %c0_i32_1 = arith.constant 0 : i32
    return %c0_i32, %c0_i32_0, %arg0 : i32, i32, i32
  }
  func.func @transform_4(%arg0: i32) -> (i32, i32) {
    %c0_i32 = arith.constant 0 : i32
    %c0_i32_0 = arith.constant 0 : i32
    return %c0_i32, %arg0 : i32, i32
  }
  func.func @transform_5(%arg0: i32) -> (i32, i32) {
    %c0_i32 = arith.constant 0 : i32
    %c0_i32_0 = arith.constant 0 : i32
    %c0_i32_1 = arith.constant 0 : i32
    return %c0_i32, %c0_i32_0 : i32, i32
  }
}

</mosaic_0001>

<llo_original>
// kernel: effnet_landmark.2
$region0: #{effnet_landmark.2}
  #allocation0 [shape = 'u32[]', space=smem, size = 0x4, offset = 0x4, fixed_abs, tag = 'smem constant byte address 0x4 - core index']
  #allocation1 [shape = 'u32[144,128]{1,0:T(1,128)}', space=vmem, size = 0x12000, scoped, tag = 'internal scratch']
  #allocation2 [shape = 'f32[128,1]{1,0:T(8,128)}', space=vmem, size = 0x10000, scoped, tag = 'scratch operand']
  #allocation3 [shape = 'f32[1,1]{1,0:T(1,128)S(6)}', space=smem, size = 0x200, scoped, tag = 'scoped memory for effnet_landmark.2']
  %s0 = inlined_call_operand.<no memory space> [shape: f32[1,1], index: 0, kind: input, shape index: {}]
  %s1 = inlined_call_operand.vmem [shape: f32[2,4,256], index: 1, kind: input, shape index: {}]
  %s2 = inlined_call_operand.vmem [shape: f32[128,4], index: 2, kind: input, shape index: {}]
  %s3 = inlined_call_operand.vmem [shape: f32[2,128,1], index: 3, kind: output, shape index: {}]
  %s4 = sld [smem:[#allocation0]]
  $region53: #{effnet_landmark.2} parent=0
    _
  %s6 = ssub.s32 1, %s4
  %s7 = scalar_select 0, %s6, %s4
  %8 = sst [smem:[#allocation3]] %s0
  loop: start=0, step=1, limit=6
  $region2: #{effnet_landmark.2} parent=0 // loop_pre_header
    _
  $region3: #{effnet_landmark.2} parent=0 // loop_header
    %s10 = sphi 0, %s14
    %p11 = scmp.ge.s32.totalorder %s10, 6
    %s17 = sphi 0, %s29
    %s18 = sphi 0, %s25
    %s19 = sphi 0, %s17
    %s20 = sphi 0, %s18
    %s21 = sphi 0, %s19
    %s22 = sphi 0, %s20
    %s30 = sphi 0, %s30
    %s32 = sphi 0, %s30
    %s33 = sphi 0, %s32
    %s47 = sphi 0, %s33
    %s55 = sphi 0, %s57
    %s58 = sphi 0, %s55
    %s59 = sphi 0, %s58
    %s75 = sphi 0, %s59
    %s79 = sphi 0, %s79
    %s81 = sphi 0, %s79
    %s82 = sphi 0, %s81
    %s96 = sphi 0, %s82
    %s102 = sphi 0, %s104
    %s105 = sphi 0, %s102
    %s106 = sphi 0, %s105
    %s122 = sphi 0, %s106
  $region4: #{effnet_landmark.2} parent=0 // loop_header_branch
    %13 = sbr.rel (%p11) target = $region8
  $region5: #{effnet_landmark.2} parent=0 // loop_body
    %s15 = ssub.s32 %s10, 1
    %s16 = ssub.s32 %s10, 2
    %s23 = sadd.s32 1, %s18
    %p24 = scmp.ge.s32.totalorder %s23, 2
    %s25 = scalar_select %p24, 0, %s23
    %s26 = sadd.s32 1, %s17
    %s27 = scalar_select %p24, %s26, %s17
    %p28 = scmp.ge.s32.totalorder %s27, 2
    %s29 = scalar_select %p28, 0, %s27
    %s31 = sadd.s32 %s30, 1
    %p34 = scmp.eq.s32.totalorder %s10, 3
    %p35 = scmp.ne.s32.totalorder %s30, %s32
    %p36 = scmp.eq.s32.totalorder %s10, 0
    %p37 = por %p35, %p36
    %p38 = scmp.ne.s32.totalorder %s30, %s32
    %p39 = scmp.eq.s32.totalorder %s15, 3
    %p40 = por %p38, %p39
    %p41 = scmp.ne.s32.totalorder %s32, %s33
    %p42 = scmp.eq.s32.totalorder %s15, 0
    %p43 = por %p41, %p42
    %p44 = scmp.ne.s32.totalorder %s32, %s33
    %p45 = scmp.eq.s32.totalorder %s16, 3
    %p46 = por %p44, %p45
    %p48 = scmp.ne.s32.totalorder %s33, %s47
    %p49 = scmp.eq.s32.totalorder %s16, 0
    %p50 = por %p48, %p49
    %s51 = ssub.s32 %s17, %s29
    %s52 = ssub.s32 %s18, %s25
    %s53 = sor.u32 %s51, %s52
    %p54 = scmp.eq.s32.totalorder %s53, 0
    %s56 = sadd.s32 %s55, 1
    %s57 = scalar_select %p54, %s55, %s56
    %p60 = pneg %p54
    %p61 = scmp.eq.s32.totalorder %s10, 3
    %p62 = por %p60, %p61
    %p63 = scmp.ne.s32.totalorder %s55, %s58
    %p64 = scmp.eq.s32.totalorder %s10, 0
    %p65 = por %p63, %p64
    %p66 = scmp.ne.s32.totalorder %s55, %s58
    %p67 = scmp.eq.s32.totalorder %s15, 3
    %p68 = por %p66, %p67
    %p69 = scmp.ne.s32.totalorder %s58, %s59
    %p70 = scmp.eq.s32.totalorder %s15, 0
    %p71 = por %p69, %p70
    %p72 = scmp.ne.s32.totalorder %s58, %s59
    %p73 = scmp.eq.s32.totalorder %s16, 3
    %p74 = por %p72, %p73
    %p76 = scmp.ne.s32.totalorder %s59, %s75
    %p77 = scmp.eq.s32.totalorder %s16, 0
    %p78 = por %p76, %p77
    %s80 = sadd.s32 %s79, 1
    %p83 = scmp.eq.s32.totalorder %s10, 3
    %p84 = scmp.ne.s32.totalorder %s79, %s81
    %p85 = scmp.eq.s32.totalorder %s10, 0
    %p86 = por %p84, %p85
    %p87 = scmp.ne.s32.totalorder %s79, %s81
    %p88 = scmp.eq.s32.totalorder %s15, 3
    %p89 = por %p87, %p88
    %p90 = scmp.ne.s32.totalorder %s81, %s82
    %p91 = scmp.eq.s32.totalorder %s15, 0
    %p92 = por %p90, %p91
    %p93 = scmp.ne.s32.totalorder %s81, %s82
    %p94 = scmp.eq.s32.totalorder %s16, 3
    %p95 = por %p93, %p94
    %p97 = scmp.ne.s32.totalorder %s82, %s96
    %p98 = scmp.eq.s32.totalorder %s16, 0
    %p99 = por %p97, %p98
    %s100 = ssub.s32 %s17, %s29
    %p101 = scmp.eq.s32.totalorder %s100, 0
    %s103 = sadd.s32 %s102, 1
    %s104 = scalar_select %p101, %s102, %s103
    %p107 = pneg %p101
    %p108 = scmp.eq.s32.totalorder %s10, 3
    %p109 = por %p107, %p108
    %p110 = scmp.ne.s32.totalorder %s102, %s105
    %p111 = scmp.eq.s32.totalorder %s10, 0
    %p112 = por %p110, %p111
    %p113 = scmp.ne.s32.totalorder %s102, %s105
    %p114 = scmp.eq.s32.totalorder %s15, 3
    %p115 = por %p113, %p114
    %p116 = scmp.ne.s32.totalorder %s105, %s106
    %p117 = scmp.eq.s32.totalorder %s15, 0
    %p118 = por %p116, %p117
    %p119 = scmp.ne.s32.totalorder %s105, %s106
    %p120 = scmp.eq.s32.totalorder %s16, 3
    %p121 = por %p119, %p120
    %p123 = scmp.ne.s32.totalorder %s106, %s122
    %p124 = scmp.eq.s32.totalorder %s16, 0
    %p125 = por %p123, %p124
    %p126 = scmp.le.s32.totalorder 1, %s10
    %p127 = scmp.lt.s32.totalorder %s10, 5
    %p128 = pnand %p126, %p127
    %p129 = pneg %p128
    // Predicated region
    $region9: #{effnet_landmark.2} parent=5 // pred_check
      _
    $region10: #{effnet_landmark.2} parent=5 // pred_check_branch
      %131 = sbr.rel (%p128) target = $region12
    $region11: #{effnet_landmark.2} parent=5 // pred_region
      %s132 = ssub.s32 %s10, 1
      // Predicated region
      $region13: #{effnet_landmark.2} parent=11 // pred_check
        %p133 = pneg %p43
      $region14: #{effnet_landmark.2} parent=11 // pred_check_branch
        %135 = sbr.rel (%p133) target = $region16
      $region15: #{effnet_landmark.2} parent=11 // pred_region
        _
      $region16: #{effnet_landmark.2} parent=11 // pred_fallthru
        _
      // Predicated region
      $region17: #{effnet_landmark.2} parent=11 // pred_check
        %p136 = pneg %p92
      $region18: #{effnet_landmark.2} parent=11 // pred_check_branch
        %138 = sbr.rel (%p136) target = $region20
      $region19: #{effnet_landmark.2} parent=11 // pred_region
        _
      $region20: #{effnet_landmark.2} parent=11 // pred_fallthru
        _
    $region12: #{effnet_landmark.2} parent=5 // pred_fallthru
      _
    %p139 = scmp.lt.s32.totalorder %s10, 4
    // Predicated region
    $region21: #{effnet_landmark.2} parent=5 // pred_check
      %p140 = pneg %p139
    $region22: #{effnet_landmark.2} parent=5 // pred_check_branch
      %142 = sbr.rel (%p140) target = $region24
    $region23: #{effnet_landmark.2} parent=5 // pred_region
      // Predicated region
      $region25: #{effnet_landmark.2} parent=23 // pred_check
        %p143 = pneg %p65
      $region26: #{effnet_landmark.2} parent=23 // pred_check_branch
        %145 = sbr.rel (%p143) target = $region28
      $region27: #{effnet_landmark.2} parent=23 // pred_region
        %p146 = scmp.lt.s32.totalorder %s17, 1
        %s147 = scalar_select %p146, %s17, 1
        %p148 = scmp.lt.s32.totalorder %s18, 1
        %s149 = scalar_select %p148, %s18, 1
        %s150 = smul.addr %s147, 2
        %s151 = sadd.s32 %s149, %s150
        %s152 = smul.addr %s151, 4
        %s153 = scalar_lea.vmem %s1, %s152
      $region28: #{effnet_landmark.2} parent=23 // pred_fallthru
        _
    $region24: #{effnet_landmark.2} parent=5 // pred_fallthru
      _
    %p154 = scmp.le.s32.totalorder 1, %s10
    %p155 = scmp.lt.s32.totalorder %s10, 5
    %p156 = pnand %p154, %p155
    %p157 = pneg %p156
    // Predicated region
    $region29: #{effnet_landmark.2} parent=5 // pred_check
      _
    $region30: #{effnet_landmark.2} parent=5 // pred_check_branch
      %159 = sbr.rel (%p156) target = $region32
    $region31: #{effnet_landmark.2} parent=5 // pred_region
      %s160 = ssub.s32 %s10, 1
      %p161 = pneg %p43
      %p162 = pneg %p40
      %p163 = scmp.lt.s32.totalorder %s19, 1
      %s164 = scalar_select %p163, %s19, 1
      %p165 = scmp.lt.s32.totalorder %s20, 1
      %s166 = scalar_select %p165, %s20, 1
      %s167 = smul.addr %s164, 2
      %s168 = sadd.s32 %s166, %s167
      %s169 = smul.addr %s168, 4
      %s170 = scalar_lea.vmem %s1, %s169
      %p171 = pneg %p71
      %p172 = pneg %p68
      %p173 = pneg %p92
      %p174 = pneg %p89
      %p175 = pneg %p118
      %p176 = pneg %p115
      %p177 = scmp.lt.s32.totalorder %s19, 1
      %s178 = scalar_select %p177, %s19, 1
      %s179 = smul.addr %s178, 16
      %s180 = smul.addr %s179, 8
      %s181 = scalar_lea.vmem %s3, %s180
      %p182 = scmp.lt.s32.totalorder %s19, 1
      %s183 = scalar_select %p182, %s19, 1
      %p184 = scmp.lt.s32.totalorder %s20, 1
      %s185 = scalar_select %p184, %s20, 1
      %s186 = smul.addr %s183, 2
      %s187 = sadd.s32 %s185, %s186
      %s188 = smul.addr %s187, 4
      %s189 = scalar_lea.vmem %s1, %s188
      %p190 = scmp.lt.s32.totalorder %s19, 1
      %s191 = scalar_select %p190, %s19, 1
      %s192 = smul.addr %s191, 16
      %s193 = smul.addr %s192, 8
      %s194 = scalar_lea.vmem %s3, %s193
      %p195 = scmp.eq.s32.totalorder %s20, 0
      // Predicated region
      $region33: #{effnet_landmark.2} parent=31 // pred_check
        %p196 = pneg %p195
      $region34: #{effnet_landmark.2} parent=31 // pred_check_branch
        %198 = sbr.rel (%p196) target = $region36
      $region35: #{effnet_landmark.2} parent=31 // pred_region
        %vm199 = vcmask 7168
        %200 = vst.msk [vmem:[#allocation2] sm:$0xff] %vm199, 0.0
        %201 = vst.msk [vmem:[#allocation2 + $0x8] sm:$0xff] %vm199, 0.0
        %202 = vst.msk [vmem:[#allocation2 + $0x10] sm:$0xff] %vm199, 0.0
        %203 = vst.msk [vmem:[#allocation2 + $0x18] sm:$0xff] %vm199, 0.0
        %204 = vst.msk [vmem:[#allocation2 + $0x20] sm:$0xff] %vm199, 0.0
        %205 = vst.msk [vmem:[#allocation2 + $0x28] sm:$0xff] %vm199, 0.0
        %206 = vst.msk [vmem:[#allocation2 + $0x30] sm:$0xff] %vm199, 0.0
        %207 = vst.msk [vmem:[#allocation2 + $0x38] sm:$0xff] %vm199, 0.0
        %208 = vst.msk [vmem:[#allocation2 + $0x40] sm:$0xff] %vm199, 0.0
        %209 = vst.msk [vmem:[#allocation2 + $0x48] sm:$0xff] %vm199, 0.0
        %210 = vst.msk [vmem:[#allocation2 + $0x50] sm:$0xff] %vm199, 0.0
        %211 = vst.msk [vmem:[#allocation2 + $0x58] sm:$0xff] %vm199, 0.0
        %212 = vst.msk [vmem:[#allocation2 + $0x60] sm:$0xff] %vm199, 0.0
        %213 = vst.msk [vmem:[#allocation2 + $0x68] sm:$0xff] %vm199, 0.0
        %214 = vst.msk [vmem:[#allocation2 + $0x70] sm:$0xff] %vm199, 0.0
        %215 = vst.msk [vmem:[#allocation2 + $0x78] sm:$0xff] %vm199, 0.0
      $region36: #{effnet_landmark.2} parent=31 // pred_fallthru
        _
      %v216 = vld [vmem:[%s189] sm:$0xf]
      %v217 = vld [vmem:[%s2] sm:$0xff]
      %v218 = vld [vmem:[%s2 + $0x8] sm:$0xff]
      %v219 = vld [vmem:[%s2 + $0x10] sm:$0xff]
      %v220 = vld [vmem:[%s2 + $0x18] sm:$0xff]
      %v221 = vld [vmem:[%s2 + $0x20] sm:$0xff]
      %v222 = vld [vmem:[%s2 + $0x28] sm:$0xff]
      %v223 = vld [vmem:[%s2 + $0x30] sm:$0xff]
      %v224 = vld [vmem:[%s2 + $0x38] sm:$0xff]
      %v225 = vld [vmem:[%s2 + $0x40] sm:$0xff]
      %v226 = vld [vmem:[%s2 + $0x48] sm:$0xff]
      %v227 = vld [vmem:[%s2 + $0x50] sm:$0xff]
      %v228 = vld [vmem:[%s2 + $0x58] sm:$0xff]
      %v229 = vld [vmem:[%s2 + $0x60] sm:$0xff]
      %v230 = vld [vmem:[%s2 + $0x68] sm:$0xff]
      %v231 = vld [vmem:[%s2 + $0x70] sm:$0xff]
      %v232 = vld [vmem:[%s2 + $0x78] sm:$0xff]
      %234 = vset.pattern.permute.xlu0 0
      %235 = vperm.xlu0 %234, %v217
      %v236 = vpop.permute.xlu0 %235
      %239 = vset.pattern.permute.xlu0 0
      %240 = vperm.xlu0 %239, %v218
      %v241 = vpop.permute.xlu0 %240
      %244 = vset.pattern.permute.xlu0 0
      %245 = vperm.xlu0 %244, %v219
      %v246 = vpop.permute.xlu0 %245
      %249 = vset.pattern.permute.xlu0 0
      %250 = vperm.xlu0 %249, %v220
      %v251 = vpop.permute.xlu0 %250
      %254 = vset.pattern.permute.xlu0 0
      %255 = vperm.xlu0 %254, %v221
      %v256 = vpop.permute.xlu0 %255
      %259 = vset.pattern.permute.xlu0 0
      %260 = vperm.xlu0 %259, %v222
      %v261 = vpop.permute.xlu0 %260
      %264 = vset.pattern.permute.xlu0 0
      %265 = vperm.xlu0 %264, %v223
      %v266 = vpop.permute.xlu0 %265
      %269 = vset.pattern.permute.xlu0 0
      %270 = vperm.xlu0 %269, %v224
      %v271 = vpop.permute.xlu0 %270
      %274 = vset.pattern.permute.xlu0 0
      %275 = vperm.xlu0 %274, %v225
      %v276 = vpop.permute.xlu0 %275
      %279 = vset.pattern.permute.xlu0 0
      %280 = vperm.xlu0 %279, %v226
      %v281 = vpop.permute.xlu0 %280
      %284 = vset.pattern.permute.xlu0 0
      %285 = vperm.xlu0 %284, %v227
      %v286 = vpop.permute.xlu0 %285
      %289 = vset.pattern.permute.xlu0 0
      %290 = vperm.xlu0 %289, %v228
      %v291 = vpop.permute.xlu0 %290
      %294 = vset.pattern.permute.xlu0 0
      %295 = vperm.xlu0 %294, %v229
      %v296 = vpop.permute.xlu0 %295
      %299 = vset.pattern.permute.xlu0 0
      %300 = vperm.xlu0 %299, %v230
      %v301 = vpop.permute.xlu0 %300
      %304 = vset.pattern.permute.xlu0 0
      %305 = vperm.xlu0 %304, %v231
      %v306 = vpop.permute.xlu0 %305
      %309 = vset.pattern.permute.xlu0 0
      %310 = vperm.xlu0 %309, %v232
      %v311 = vpop.permute.xlu0 %310
      %v313 = vlaneseq
      %v314 = vshrl.u32 %v313, 7
      %v315 = vsub.s32 0, %v314
      %v316 = vrot.slane %v216, %v315
      %v317 = vmul.f32 %v236, %v316
      %v318 = vmul.f32 %v241, %v316
      %v319 = vmul.f32 %v246, %v316
      %v320 = vmul.f32 %v251, %v316
      %v321 = vmul.f32 %v256, %v316
      %v322 = vmul.f32 %v261, %v316
      %v323 = vmul.f32 %v266, %v316
      %v324 = vmul.f32 %v271, %v316
      %v325 = vmul.f32 %v276, %v316
      %v326 = vmul.f32 %v281, %v316
      %v327 = vmul.f32 %v286, %v316
      %v328 = vmul.f32 %v291, %v316
      %v329 = vmul.f32 %v296, %v316
      %v330 = vmul.f32 %v301, %v316
      %v331 = vmul.f32 %v306, %v316
      %v332 = vmul.f32 %v311, %v316
      %333 = vset.pattern.permute.xlu0 1
      %334 = vperm.xlu0 %333, %v217
      %v335 = vpop.permute.xlu0 %334
      %337 = vset.pattern.permute.xlu0 1
      %338 = vperm.xlu0 %337, %v218
      %v339 = vpop.permute.xlu0 %338
      %341 = vset.pattern.permute.xlu0 1
      %342 = vperm.xlu0 %341, %v219
      %v343 = vpop.permute.xlu0 %342
      %345 = vset.pattern.permute.xlu0 1
      %346 = vperm.xlu0 %345, %v220
      %v347 = vpop.permute.xlu0 %346
      %349 = vset.pattern.permute.xlu0 1
      %350 = vperm.xlu0 %349, %v221
      %v351 = vpop.permute.xlu0 %350
      %353 = vset.pattern.permute.xlu0 1
      %354 = vperm.xlu0 %353, %v222
      %v355 = vpop.permute.xlu0 %354
      %357 = vset.pattern.permute.xlu0 1
      %358 = vperm.xlu0 %357, %v223
      %v359 = vpop.permute.xlu0 %358
      %361 = vset.pattern.permute.xlu0 1
      %362 = vperm.xlu0 %361, %v224
      %v363 = vpop.permute.xlu0 %362
      %365 = vset.pattern.permute.xlu0 1
      %366 = vperm.xlu0 %365, %v225
      %v367 = vpop.permute.xlu0 %366
      %369 = vset.pattern.permute.xlu0 1
      %370 = vperm.xlu0 %369, %v226
      %v371 = vpop.permute.xlu0 %370
      %373 = vset.pattern.permute.xlu0 1
      %374 = vperm.xlu0 %373, %v227
      %v375 = vpop.permute.xlu0 %374
      %377 = vset.pattern.permute.xlu0 1
      %378 = vperm.xlu0 %377, %v228
      %v379 = vpop.permute.xlu0 %378
      %381 = vset.pattern.permute.xlu0 1
      %382 = vperm.xlu0 %381, %v229
      %v383 = vpop.permute.xlu0 %382
      %385 = vset.pattern.permute.xlu0 1
      %386 = vperm.xlu0 %385, %v230
      %v387 = vpop.permute.xlu0 %386
      %389 = vset.pattern.permute.xlu0 1
      %390 = vperm.xlu0 %389, %v231
      %v391 = vpop.permute.xlu0 %390
      %393 = vset.pattern.permute.xlu0 1
      %394 = vperm.xlu0 %393, %v232
      %v395 = vpop.permute.xlu0 %394
      %v397 = vlaneseq
      %v398 = vshrl.u32 %v397, 7
      %v399 = vsub.s32 1, %v398
      %v400 = vrot.slane %v216, %v399
      %v401 = vmul.f32 %v335, %v400
      %v402 = vmul.f32 %v339, %v400
      %v403 = vmul.f32 %v343, %v400
      %v404 = vmul.f32 %v347, %v400
      %v405 = vmul.f32 %v351, %v400
      %v406 = vmul.f32 %v355, %v400
      %v407 = vmul.f32 %v359, %v400
      %v408 = vmul.f32 %v363, %v400
      %v409 = vmul.f32 %v367, %v400
      %v410 = vmul.f32 %v371, %v400
      %v411 = vmul.f32 %v375, %v400
      %v412 = vmul.f32 %v379, %v400
      %v413 = vmul.f32 %v383, %v400
      %v414 = vmul.f32 %v387, %v400
      %v415 = vmul.f32 %v391, %v400
      %v416 = vmul.f32 %v395, %v400
      %v417 = vadd.f32 %v317, %v401
      %v418 = vadd.f32 %v318, %v402
      %v419 = vadd.f32 %v319, %v403
      %v420 = vadd.f32 %v320, %v404
      %v421 = vadd.f32 %v321, %v405
      %v422 = vadd.f32 %v322, %v406
      %v423 = vadd.f32 %v323, %v407
      %v424 = vadd.f32 %v324, %v408
      %v425 = vadd.f32 %v325, %v409
      %v426 = vadd.f32 %v326, %v410
      %v427 = vadd.f32 %v327, %v411
      %v428 = vadd.f32 %v328, %v412
      %v429 = vadd.f32 %v329, %v413
      %v430 = vadd.f32 %v330, %v414
      %v431 = vadd.f32 %v331, %v415
      %v432 = vadd.f32 %v332, %v416
      %433 = vset.pattern.permute.xlu0 2
      %434 = vperm.xlu0 %433, %v217
      %v435 = vpop.permute.xlu0 %434
      %437 = vset.pattern.permute.xlu0 2
      %438 = vperm.xlu0 %437, %v218
      %v439 = vpop.permute.xlu0 %438
      %441 = vset.pattern.permute.xlu0 2
      %442 = vperm.xlu0 %441, %v219
      %v443 = vpop.permute.xlu0 %442
      %445 = vset.pattern.permute.xlu0 2
      %446 = vperm.xlu0 %445, %v220
      %v447 = vpop.permute.xlu0 %446
      %449 = vset.pattern.permute.xlu0 2
      %450 = vperm.xlu0 %449, %v221
      %v451 = vpop.permute.xlu0 %450
      %453 = vset.pattern.permute.xlu0 2
      %454 = vperm.xlu0 %453, %v222
      %v455 = vpop.permute.xlu0 %454
      %457 = vset.pattern.permute.xlu0 2
      %458 = vperm.xlu0 %457, %v223
      %v459 = vpop.permute.xlu0 %458
      %461 = vset.pattern.permute.xlu0 2
      %462 = vperm.xlu0 %461, %v224
      %v463 = vpop.permute.xlu0 %462
      %465 = vset.pattern.permute.xlu0 2
      %466 = vperm.xlu0 %465, %v225
      %v467 = vpop.permute.xlu0 %466
      %469 = vset.pattern.permute.xlu0 2
      %470 = vperm.xlu0 %469, %v226
      %v471 = vpop.permute.xlu0 %470
      %473 = vset.pattern.permute.xlu0 2
      %474 = vperm.xlu0 %473, %v227
      %v475 = vpop.permute.xlu0 %474
      %477 = vset.pattern.permute.xlu0 2
      %478 = vperm.xlu0 %477, %v228
      %v479 = vpop.permute.xlu0 %478
      %481 = vset.pattern.permute.xlu0 2
      %482 = vperm.xlu0 %481, %v229
      %v483 = vpop.permute.xlu0 %482
      %485 = vset.pattern.permute.xlu0 2
      %486 = vperm.xlu0 %485, %v230
      %v487 = vpop.permute.xlu0 %486
      %489 = vset.pattern.permute.xlu0 2
      %490 = vperm.xlu0 %489, %v231
      %v491 = vpop.permute.xlu0 %490
      %493 = vset.pattern.permute.xlu0 2
      %494 = vperm.xlu0 %493, %v232
      %v495 = vpop.permute.xlu0 %494
      %v497 = vlaneseq
      %v498 = vshrl.u32 %v497, 7
      %v499 = vsub.s32 2, %v498
      %v500 = vrot.slane %v216, %v499
      %v501 = vmul.f32 %v435, %v500
      %v502 = vmul.f32 %v439, %v500
      %v503 = vmul.f32 %v443, %v500
      %v504 = vmul.f32 %v447, %v500
      %v505 = vmul.f32 %v451, %v500
      %v506 = vmul.f32 %v455, %v500
      %v507 = vmul.f32 %v459, %v500
      %v508 = vmul.f32 %v463, %v500
      %v509 = vmul.f32 %v467, %v500
      %v510 = vmul.f32 %v471, %v500
      %v511 = vmul.f32 %v475, %v500
      %v512 = vmul.f32 %v479, %v500
      %v513 = vmul.f32 %v483, %v500
      %v514 = vmul.f32 %v487, %v500
      %v515 = vmul.f32 %v491, %v500
      %v516 = vmul.f32 %v495, %v500
      %v517 = vadd.f32 %v417, %v501
      %v518 = vadd.f32 %v418, %v502
      %v519 = vadd.f32 %v419, %v503
      %v520 = vadd.f32 %v420, %v504
      %v521 = vadd.f32 %v421, %v505
      %v522 = vadd.f32 %v422, %v506
      %v523 = vadd.f32 %v423, %v507
      %v524 = vadd.f32 %v424, %v508
      %v525 = vadd.f32 %v425, %v509
      %v526 = vadd.f32 %v426, %v510
      %v527 = vadd.f32 %v427, %v511
      %v528 = vadd.f32 %v428, %v512
      %v529 = vadd.f32 %v429, %v513
      %v530 = vadd.f32 %v430, %v514
      %v531 = vadd.f32 %v431, %v515
      %v532 = vadd.f32 %v432, %v516
      %533 = vset.pattern.permute.xlu0 3
      %534 = vperm.xlu0 %533, %v217
      %v535 = vpop.permute.xlu0 %534
      %537 = vset.pattern.permute.xlu0 3
      %538 = vperm.xlu0 %537, %v218
      %v539 = vpop.permute.xlu0 %538
      %541 = vset.pattern.permute.xlu0 3
      %542 = vperm.xlu0 %541, %v219
      %v543 = vpop.permute.xlu0 %542
      %545 = vset.pattern.permute.xlu0 3
      %546 = vperm.xlu0 %545, %v220
      %v547 = vpop.permute.xlu0 %546
      %549 = vset.pattern.permute.xlu0 3
      %550 = vperm.xlu0 %549, %v221
      %v551 = vpop.permute.xlu0 %550
      %553 = vset.pattern.permute.xlu0 3
      %554 = vperm.xlu0 %553, %v222
      %v555 = vpop.permute.xlu0 %554
      %557 = vset.pattern.permute.xlu0 3
      %558 = vperm.xlu0 %557, %v223
      %v559 = vpop.permute.xlu0 %558
      %561 = vset.pattern.permute.xlu0 3
      %562 = vperm.xlu0 %561, %v224
      %v563 = vpop.permute.xlu0 %562
      %565 = vset.pattern.permute.xlu0 3
      %566 = vperm.xlu0 %565, %v225
      %v567 = vpop.permute.xlu0 %566
      %569 = vset.pattern.permute.xlu0 3
      %570 = vperm.xlu0 %569, %v226
      %v571 = vpop.permute.xlu0 %570
      %573 = vset.pattern.permute.xlu0 3
      %574 = vperm.xlu0 %573, %v227
      %v575 = vpop.permute.xlu0 %574
      %577 = vset.pattern.permute.xlu0 3
      %578 = vperm.xlu0 %577, %v228
      %v579 = vpop.permute.xlu0 %578
      %581 = vset.pattern.permute.xlu0 3
      %582 = vperm.xlu0 %581, %v229
      %v583 = vpop.permute.xlu0 %582
      %585 = vset.pattern.permute.xlu0 3
      %586 = vperm.xlu0 %585, %v230
      %v587 = vpop.permute.xlu0 %586
      %589 = vset.pattern.permute.xlu0 3
      %590 = vperm.xlu0 %589, %v231
      %v591 = vpop.permute.xlu0 %590
      %593 = vset.pattern.permute.xlu0 3
      %594 = vperm.xlu0 %593, %v232
      %v595 = vpop.permute.xlu0 %594
      %v597 = vlaneseq
      %v598 = vshrl.u32 %v597, 7
      %v599 = vsub.s32 3, %v598
      %v600 = vrot.slane %v216, %v599
      %v601 = vmul.f32 %v535, %v600
      %v602 = vmul.f32 %v539, %v600
      %v603 = vmul.f32 %v543, %v600
      %v604 = vmul.f32 %v547, %v600
      %v605 = vmul.f32 %v551, %v600
      %v606 = vmul.f32 %v555, %v600
      %v607 = vmul.f32 %v559, %v600
      %v608 = vmul.f32 %v563, %v600
      %v609 = vmul.f32 %v567, %v600
      %v610 = vmul.f32 %v571, %v600
      %v611 = vmul.f32 %v575, %v600
      %v612 = vmul.f32 %v579, %v600
      %v613 = vmul.f32 %v583, %v600
      %v614 = vmul.f32 %v587, %v600
      %v615 = vmul.f32 %v591, %v600
      %v616 = vmul.f32 %v595, %v600
      %v617 = vadd.f32 %v517, %v601
      %v618 = vadd.f32 %v518, %v602
      %v619 = vadd.f32 %v519, %v603
      %v620 = vadd.f32 %v520, %v604
      %v621 = vadd.f32 %v521, %v605
      %v622 = vadd.f32 %v522, %v606
      %v623 = vadd.f32 %v523, %v607
      %v624 = vadd.f32 %v524, %v608
      %v625 = vadd.f32 %v525, %v609
      %v626 = vadd.f32 %v526, %v610
      %v627 = vadd.f32 %v527, %v611
      %v628 = vadd.f32 %v528, %v612
      %v629 = vadd.f32 %v529, %v613
      %v630 = vadd.f32 %v530, %v614
      %v631 = vadd.f32 %v531, %v615
      %v632 = vadd.f32 %v532, %v616
      %v633 = vmax.f32 %v617, 1e-06
      %v634 = vmax.f32 %v618, 1e-06
      %v635 = vmax.f32 %v619, 1e-06
      %v636 = vmax.f32 %v620, 1e-06
      %v637 = vmax.f32 %v621, 1e-06
      %v638 = vmax.f32 %v622, 1e-06
      %v639 = vmax.f32 %v623, 1e-06
      %v640 = vmax.f32 %v624, 1e-06
      %v641 = vmax.f32 %v625, 1e-06
      %v642 = vmax.f32 %v626, 1e-06
      %v643 = vmax.f32 %v627, 1e-06
      %v644 = vmax.f32 %v628, 1e-06
      %v645 = vmax.f32 %v629, 1e-06
      %v646 = vmax.f32 %v630, 1e-06
      %v647 = vmax.f32 %v631, 1e-06
      %v648 = vmax.f32 %v632, 1e-06
      %v649 = vmul.f32 %v633, %v633
      %v650 = vmul.f32 %v634, %v634
      %v651 = vmul.f32 %v635, %v635
      %v652 = vmul.f32 %v636, %v636
      %v653 = vmul.f32 %v637, %v637
      %v654 = vmul.f32 %v638, %v638
      %v655 = vmul.f32 %v639, %v639
      %v656 = vmul.f32 %v640, %v640
      %v657 = vmul.f32 %v641, %v641
      %v658 = vmul.f32 %v642, %v642
      %v659 = vmul.f32 %v643, %v643
      %v660 = vmul.f32 %v644, %v644
      %v661 = vmul.f32 %v645, %v645
      %v662 = vmul.f32 %v646, %v646
      %v663 = vmul.f32 %v647, %v647
      %v664 = vmul.f32 %v648, %v648
      %v665 = vmul.f32 %v649, %v633
      %v666 = vmul.f32 %v650, %v634
      %v667 = vmul.f32 %v651, %v635
      %v668 = vmul.f32 %v652, %v636
      %v669 = vmul.f32 %v653, %v637
      %v670 = vmul.f32 %v654, %v638
      %v671 = vmul.f32 %v655, %v639
      %v672 = vmul.f32 %v656, %v640
      %v673 = vmul.f32 %v657, %v641
      %v674 = vmul.f32 %v658, %v642
      %v675 = vmul.f32 %v659, %v643
      %v676 = vmul.f32 %v660, %v644
      %v677 = vmul.f32 %v661, %v645
      %v678 = vmul.f32 %v662, %v646
      %v679 = vmul.f32 %v663, %v647
      %v680 = vmul.f32 %v664, %v648
      %v681 = vld [vmem:[#allocation2] sm:$0xff]
      %v682 = vld [vmem:[#allocation2 + $0x8] sm:$0xff]
      %v683 = vld [vmem:[#allocation2 + $0x10] sm:$0xff]
      %v684 = vld [vmem:[#allocation2 + $0x18] sm:$0xff]
      %v685 = vld [vmem:[#allocation2 + $0x20] sm:$0xff]
      %v686 = vld [vmem:[#allocation2 + $0x28] sm:$0xff]
      %v687 = vld [vmem:[#allocation2 + $0x30] sm:$0xff]
      %v688 = vld [vmem:[#allocation2 + $0x38] sm:$0xff]
      %v689 = vld [vmem:[#allocation2 + $0x40] sm:$0xff]
      %v690 = vld [vmem:[#allocation2 + $0x48] sm:$0xff]
      %v691 = vld [vmem:[#allocation2 + $0x50] sm:$0xff]
      %v692 = vld [vmem:[#allocation2 + $0x58] sm:$0xff]
      %v693 = vld [vmem:[#allocation2 + $0x60] sm:$0xff]
      %v694 = vld [vmem:[#allocation2 + $0x68] sm:$0xff]
      %v695 = vld [vmem:[#allocation2 + $0x70] sm:$0xff]
      %v696 = vld [vmem:[#allocation2 + $0x78] sm:$0xff]
      %697 = vadd.xlane.f32.xlu0 %v665
      %v698 = vpop.xlane.xlu0 %697
      %699 = vadd.xlane.f32.xlu0 %v666
      %v700 = vpop.xlane.xlu0 %699
      %701 = vadd.xlane.f32.xlu0 %v667
      %v702 = vpop.xlane.xlu0 %701
      %703 = vadd.xlane.f32.xlu0 %v668
      %v704 = vpop.xlane.xlu0 %703
      %705 = vadd.xlane.f32.xlu0 %v669
      %v706 = vpop.xlane.xlu0 %705
      %707 = vadd.xlane.f32.xlu0 %v670
      %v708 = vpop.xlane.xlu0 %707
      %709 = vadd.xlane.f32.xlu0 %v671
      %v710 = vpop.xlane.xlu0 %709
      %711 = vadd.xlane.f32.xlu0 %v672
      %v712 = vpop.xlane.xlu0 %711
      %713 = vadd.xlane.f32.xlu0 %v673
      %v714 = vpop.xlane.xlu0 %713
      %715 = vadd.xlane.f32.xlu0 %v674
      %v716 = vpop.xlane.xlu0 %715
      %717 = vadd.xlane.f32.xlu0 %v675
      %v718 = vpop.xlane.xlu0 %717
      %719 = vadd.xlane.f32.xlu0 %v676
      %v720 = vpop.xlane.xlu0 %719
      %721 = vadd.xlane.f32.xlu0 %v677
      %v722 = vpop.xlane.xlu0 %721
      %723 = vadd.xlane.f32.xlu0 %v678
      %v724 = vpop.xlane.xlu0 %723
      %725 = vadd.xlane.f32.xlu0 %v679
      %v726 = vpop.xlane.xlu0 %725
      %727 = vadd.xlane.f32.xlu0 %v680
      %v728 = vpop.xlane.xlu0 %727
      %v729 = vadd.f32 %v681, %v698
      %v730 = vadd.f32 %v682, %v700
      %v731 = vadd.f32 %v683, %v702
      %v732 = vadd.f32 %v684, %v704
      %v733 = vadd.f32 %v685, %v706
      %v734 = vadd.f32 %v686, %v708
      %v735 = vadd.f32 %v687, %v710
      %v736 = vadd.f32 %v688, %v712
      %v737 = vadd.f32 %v689, %v714
      %v738 = vadd.f32 %v690, %v716
      %v739 = vadd.f32 %v691, %v718
      %v740 = vadd.f32 %v692, %v720
      %v741 = vadd.f32 %v693, %v722
      %v742 = vadd.f32 %v694, %v724
      %v743 = vadd.f32 %v695, %v726
      %v744 = vadd.f32 %v696, %v728
      %vm745 = vcmask 7168
      %746 = vst.msk [vmem:[#allocation2] sm:$0xff] %vm745, %v729
      %747 = vst.msk [vmem:[#allocation2 + $0x8] sm:$0xff] %vm745, %v730
      %748 = vst.msk [vmem:[#allocation2 + $0x10] sm:$0xff] %vm745, %v731
      %749 = vst.msk [vmem:[#allocation2 + $0x18] sm:$0xff] %vm745, %v732
      %750 = vst.msk [vmem:[#allocation2 + $0x20] sm:$0xff] %vm745, %v733
      %751 = vst.msk [vmem:[#allocation2 + $0x28] sm:$0xff] %vm745, %v734
      %752 = vst.msk [vmem:[#allocation2 + $0x30] sm:$0xff] %vm745, %v735
      %753 = vst.msk [vmem:[#allocation2 + $0x38] sm:$0xff] %vm745, %v736
      %754 = vst.msk [vmem:[#allocation2 + $0x40] sm:$0xff] %vm745, %v737
      %755 = vst.msk [vmem:[#allocation2 + $0x48] sm:$0xff] %vm745, %v738
      %756 = vst.msk [vmem:[#allocation2 + $0x50] sm:$0xff] %vm745, %v739
      %757 = vst.msk [vmem:[#allocation2 + $0x58] sm:$0xff] %vm745, %v740
      %758 = vst.msk [vmem:[#allocation2 + $0x60] sm:$0xff] %vm745, %v741
      %759 = vst.msk [vmem:[#allocation2 + $0x68] sm:$0xff] %vm745, %v742
      %760 = vst.msk [vmem:[#allocation2 + $0x70] sm:$0xff] %vm745, %v743
      %761 = vst.msk [vmem:[#allocation2 + $0x78] sm:$0xff] %vm745, %v744
      %p762 = scmp.eq.s32.totalorder %s20, 1
      // Predicated region
      $region37: #{effnet_landmark.2} parent=31 // pred_check
        %p763 = pneg %p762
      $region38: #{effnet_landmark.2} parent=31 // pred_check_branch
        %765 = sbr.rel (%p763) target = $region40
      $region39: #{effnet_landmark.2} parent=31 // pred_region
        %v766 = vld [vmem:[#allocation2] sm:$0xff]
        %v767 = vld [vmem:[#allocation2 + $0x8] sm:$0xff]
        %v768 = vld [vmem:[#allocation2 + $0x10] sm:$0xff]
        %v769 = vld [vmem:[#allocation2 + $0x18] sm:$0xff]
        %v770 = vld [vmem:[#allocation2 + $0x20] sm:$0xff]
        %v771 = vld [vmem:[#allocation2 + $0x28] sm:$0xff]
        %v772 = vld [vmem:[#allocation2 + $0x30] sm:$0xff]
        %v773 = vld [vmem:[#allocation2 + $0x38] sm:$0xff]
        %v774 = vld [vmem:[#allocation2 + $0x40] sm:$0xff]
        %v775 = vld [vmem:[#allocation2 + $0x48] sm:$0xff]
        %v776 = vld [vmem:[#allocation2 + $0x50] sm:$0xff]
        %v777 = vld [vmem:[#allocation2 + $0x58] sm:$0xff]
        %v778 = vld [vmem:[#allocation2 + $0x60] sm:$0xff]
        %v779 = vld [vmem:[#allocation2 + $0x68] sm:$0xff]
        %v780 = vld [vmem:[#allocation2 + $0x70] sm:$0xff]
        %v781 = vld [vmem:[#allocation2 + $0x78] sm:$0xff]
        %v782 = vmul.f32 %v766, 0.00390625
        %v783 = vmul.f32 %v767, 0.00390625
        %v784 = vmul.f32 %v768, 0.00390625
        %v785 = vmul.f32 %v769, 0.00390625
        %v786 = vmul.f32 %v770, 0.00390625
        %v787 = vmul.f32 %v771, 0.00390625
        %v788 = vmul.f32 %v772, 0.00390625
        %v789 = vmul.f32 %v773, 0.00390625
        %v790 = vmul.f32 %v774, 0.00390625
        %v791 = vmul.f32 %v775, 0.00390625
        %v792 = vmul.f32 %v776, 0.00390625
        %v793 = vmul.f32 %v777, 0.00390625
        %v794 = vmul.f32 %v778, 0.00390625
        %v795 = vmul.f32 %v779, 0.00390625
        %v796 = vmul.f32 %v780, 0.00390625
        %v797 = vmul.f32 %v781, 0.00390625
        %v798 = vpow.f32 %v782, 0.33333334
        %v799 = vpow.f32 %v783, 0.33333334
        %v800 = vpow.f32 %v784, 0.33333334
        %v801 = vpow.f32 %v785, 0.33333334
        %v802 = vpow.f32 %v786, 0.33333334
        %v803 = vpow.f32 %v787, 0.33333334
        %v804 = vpow.f32 %v788, 0.33333334
        %v805 = vpow.f32 %v789, 0.33333334
        %v806 = vpow.f32 %v790, 0.33333334
        %v807 = vpow.f32 %v791, 0.33333334
        %v808 = vpow.f32 %v792, 0.33333334
        %v809 = vpow.f32 %v793, 0.33333334
        %v810 = vpow.f32 %v794, 0.33333334
        %v811 = vpow.f32 %v795, 0.33333334
        %v812 = vpow.f32 %v796, 0.33333334
        %v813 = vpow.f32 %v797, 0.33333334
        %814 = vst.msk [vmem:[%s194] sm:$0xff] %vm745, %v798
        %815 = vst.msk [vmem:[%s194 + $0x8] sm:$0xff] %vm745, %v799
        %816 = vst.msk [vmem:[%s194 + $0x10] sm:$0xff] %vm745, %v800
        %817 = vst.msk [vmem:[%s194 + $0x18] sm:$0xff] %vm745, %v801
        %818 = vst.msk [vmem:[%s194 + $0x20] sm:$0xff] %vm745, %v802
        %819 = vst.msk [vmem:[%s194 + $0x28] sm:$0xff] %vm745, %v803
        %820 = vst.msk [vmem:[%s194 + $0x30] sm:$0xff] %vm745, %v804
        %821 = vst.msk [vmem:[%s194 + $0x38] sm:$0xff] %vm745, %v805
        %822 = vst.msk [vmem:[%s194 + $0x40] sm:$0xff] %vm745, %v806
        %823 = vst.msk [vmem:[%s194 + $0x48] sm:$0xff] %vm745, %v807
        %824 = vst.msk [vmem:[%s194 + $0x50] sm:$0xff] %vm745, %v808
        %825 = vst.msk [vmem:[%s194 + $0x58] sm:$0xff] %vm745, %v809
        %826 = vst.msk [vmem:[%s194 + $0x60] sm:$0xff] %vm745, %v810
        %827 = vst.msk [vmem:[%s194 + $0x68] sm:$0xff] %vm745, %v811
        %828 = vst.msk [vmem:[%s194 + $0x70] sm:$0xff] %vm745, %v812
        %829 = vst.msk [vmem:[%s194 + $0x78] sm:$0xff] %vm745, %v813
      $region40: #{effnet_landmark.2} parent=31 // pred_fallthru
        _
      %p830 = scmp.lt.s32.totalorder %s19, 1
      %s831 = scalar_select %p830, %s19, 1
      %s832 = smul.addr %s831, 16
      %s833 = smul.addr %s832, 8
      %s834 = scalar_lea.vmem %s3, %s833
      // Predicated region
      $region41: #{effnet_landmark.2} parent=31 // pred_check
        %p835 = pneg %p115
      $region42: #{effnet_landmark.2} parent=31 // pred_check_branch
        %837 = sbr.rel (%p835) target = $region44
      $region43: #{effnet_landmark.2} parent=31 // pred_region
        _
      $region44: #{effnet_landmark.2} parent=31 // pred_fallthru
        _
    $region32: #{effnet_landmark.2} parent=5 // pred_fallthru
      _
    %p838 = scmp.le.s32.totalorder 2, %s10
    // Predicated region
    $region45: #{effnet_landmark.2} parent=5 // pred_check
      %p839 = pneg %p838
    $region46: #{effnet_landmark.2} parent=5 // pred_check_branch
      %841 = sbr.rel (%p839) target = $region48
    $region47: #{effnet_landmark.2} parent=5 // pred_region
      %s842 = ssub.s32 %s10, 2
      // Predicated region
      $region49: #{effnet_landmark.2} parent=47 // pred_check
        %p843 = pneg %p121
      $region50: #{effnet_landmark.2} parent=47 // pred_check_branch
        %845 = sbr.rel (%p843) target = $region52
      $region51: #{effnet_landmark.2} parent=47 // pred_region
        %p846 = scmp.lt.s32.totalorder %s21, 1
        %s847 = scalar_select %p846, %s21, 1
        %s848 = smul.addr %s847, 16
        %s849 = smul.addr %s848, 8
        %s850 = scalar_lea.vmem %s3, %s849
      $region52: #{effnet_landmark.2} parent=47 // pred_fallthru
        _
    $region48: #{effnet_landmark.2} parent=5 // pred_fallthru
      _
  $region6: #{effnet_landmark.2} parent=0 // loop_footer
    %s14 = sadd.s32 1, %s10
  $region7: #{effnet_landmark.2} parent=0 // loop_footer_branch
    %9 = sbr.rel target = $region3
  $region8: #{effnet_landmark.2} parent=0 // loop_exit
    _

// kernel: effnet_landmark.3
$region0: #{effnet_landmark.3}
  #allocation0 [shape = 'u32[]', space=smem, size = 0x4, offset = 0x4, fixed_abs, tag = 'smem constant byte address 0x4 - core index']
  #allocation1 [shape = 'u32[144,128]{1,0:T(1,128)}', space=vmem, size = 0x12000, scoped, tag = 'internal scratch']
  #allocation2 [shape = 'bf16[2,128]{1,0:T(2,128)(2,1)}', space=vmem, size = 0x200, scoped, tag = 'scratch operand']
  %s0 = inlined_call_operand.vmem [shape: f32[2,128], index: 0, kind: input, shape index: {}]
  %s1 = inlined_call_operand.vmem [shape: bf16[128,128], index: 1, kind: input, shape index: {}]
  %s2 = inlined_call_operand.vmem [shape: f32[1,128], index: 2, kind: input, shape index: {}]
  %s3 = inlined_call_operand.vmem [shape: bf16[3,128,128], index: 3, kind: input, shape index: {}]
  %s4 = inlined_call_operand.hbm [shape: f32[2,128], index: 4, kind: output, shape index: {0}]
  %s5 = inlined_call_operand.hbm [shape: f32[2,128], index: 5, kind: output, shape index: {1}]
  %6 = xla_tuple %s4, %s5
  %s7 = sld [smem:[#allocation0]]
  $region38: #{effnet_landmark.3} parent=0
    _
  %s9 = ssub.s32 1, %s7
  %s10 = scalar_select 0, %s9, %s7
  $region1: #{effnet_landmark.3} parent=0
    #allocation3 [shape = 'u8[1024]{0}', space=vmem, size = 0x400, scoped, tag = 'output window, operand 0, single buffered']
    #allocation4 [shape = 's32[1]{0}', space=sflag, size = 0x4, scoped, tag = 'scoped memory for effnet_landmark.3']
    #allocation5 [shape = 'u8[1024]{0}', space=vmem, size = 0x400, scoped, tag = 'output window, operand 1, single buffered']
    #allocation6 [shape = 's32[1]{0}', space=sflag, size = 0x4, scoped, tag = 'scoped memory for effnet_landmark.3']
    %11 = vsyncpa [#allocation4], 0
    %12 = vsyncpa [#allocation6], 0
    // Predicated region
    $region2: #{effnet_landmark.3} parent=1 // pred_check
      _
    $region3: #{effnet_landmark.3} parent=1 // pred_check_branch
      %14 = sbr.rel (0) target = $region5
    $region4: #{effnet_landmark.3} parent=1 // pred_region
      _
    $region5: #{effnet_landmark.3} parent=1 // pred_fallthru
      _
    // Predicated region
    $region6: #{effnet_landmark.3} parent=1 // pred_check
      _
    $region7: #{effnet_landmark.3} parent=1 // pred_check_branch
      %16 = sbr.rel (0) target = $region9
    $region8: #{effnet_landmark.3} parent=1 // pred_region
      _
    $region9: #{effnet_landmark.3} parent=1 // pred_fallthru
      _
    // Predicated region
    $region10: #{effnet_landmark.3} parent=1 // pred_check
      _
    $region11: #{effnet_landmark.3} parent=1 // pred_check_branch
      %18 = sbr.rel (0) target = $region13
    $region12: #{effnet_landmark.3} parent=1 // pred_region
      _
    $region13: #{effnet_landmark.3} parent=1 // pred_fallthru
      _
    // Predicated region
    $region14: #{effnet_landmark.3} parent=1 // pred_check
      _
    $region15: #{effnet_landmark.3} parent=1 // pred_check_branch
      %20 = sbr.rel (0) target = $region17
    $region16: #{effnet_landmark.3} parent=1 // pred_region
      _
    $region17: #{effnet_landmark.3} parent=1 // pred_fallthru
      _
    %p22 = scmp.eq.s32.totalorder 0, 0
    // Predicated region
    $region18: #{effnet_landmark.3} parent=1 // pred_check
      %p23 = pneg %p22
    $region19: #{effnet_landmark.3} parent=1 // pred_check_branch
      %25 = sbr.rel (%p23) target = $region21
    $region20: #{effnet_landmark.3} parent=1 // pred_region
      %v26 = vld [vmem:[%s0] sm:$0x3]
      %v27 = vpack.c.bf16 %v26, %v26
      %v28 = vld [vmem:[%s1] sm:$0xf]
      %v29 = vld [vmem:[%s1 + $0x4] sm:$0xf]
      %v30 = vld [vmem:[%s1 + $0x8] sm:$0xf]
      %v31 = vld [vmem:[%s1 + $0xc] sm:$0xf]
      %v32 = vld [vmem:[%s1 + $0x10] sm:$0xf]
      %v33 = vld [vmem:[%s1 + $0x14] sm:$0xf]
      %v34 = vld [vmem:[%s1 + $0x18] sm:$0xf]
      %v35 = vld [vmem:[%s1 + $0x1c] sm:$0xf]
      %v36 = vld [vmem:[%s1 + $0x20] sm:$0xf]
      %v37 = vld [vmem:[%s1 + $0x24] sm:$0xf]
      %v38 = vld [vmem:[%s1 + $0x28] sm:$0xf]
      %v39 = vld [vmem:[%s1 + $0x2c] sm:$0xf]
      %v40 = vld [vmem:[%s1 + $0x30] sm:$0xf]
      %v41 = vld [vmem:[%s1 + $0x34] sm:$0xf]
      %v42 = vld [vmem:[%s1 + $0x38] sm:$0xf]
      %v43 = vld [vmem:[%s1 + $0x3c] sm:$0xf]
      %v44 = vld [vmem:[%s2] sm:$0x1]
      %v46 = vlaneseq
      %v47 = vshrl.u32 %v46, 7
      %v48 = vsub.s32 0, %v47
      %v49 = vrot.slane %v44, %v48
      %v67 = vunpack.c.l.b16 %v28
      %v68 = vunpack.c.l.b16 %v29
      %v69 = vunpack.c.l.b16 %v30
      %v70 = vunpack.c.l.b16 %v31
      %v71 = vunpack.c.l.b16 %v32
      %v72 = vunpack.c.l.b16 %v33
      %v73 = vunpack.c.l.b16 %v34
      %v74 = vunpack.c.l.b16 %v35
      %v75 = vunpack.c.l.b16 %v36
      %v76 = vunpack.c.l.b16 %v37
      %v77 = vunpack.c.l.b16 %v38
      %v78 = vunpack.c.l.b16 %v39
      %v79 = vunpack.c.l.b16 %v40
      %v80 = vunpack.c.l.b16 %v41
      %v81 = vunpack.c.l.b16 %v42
      %v82 = vunpack.c.l.b16 %v43
      %v83 = vpack.c.b16 %v68, %v67
      %v84 = vpack.c.b16 %v70, %v69
      %v85 = vpack.c.b16 %v72, %v71
      %v86 = vpack.c.b16 %v74, %v73
      %v87 = vpack.c.b16 %v76, %v75
      %v88 = vpack.c.b16 %v78, %v77
      %v89 = vpack.c.b16 %v80, %v79
      %v90 = vpack.c.b16 %v82, %v81
      %99 = vmatprep.subr.bf16.mxu0 0
      %100 = vmatpush1.bf16.msra.mxu0 %v83
      %101 = vmatprep.subr.bf16.mxu0 0
      %102 = vmatpush1.bf16.msra.mxu0 %v84
      %103 = vmatprep.subr.bf16.mxu0 0
      %104 = vmatpush1.bf16.msra.mxu0 %v85
      %105 = vmatprep.subr.bf16.mxu0 0
      %106 = vmatpush1.bf16.msra.mxu0 %v86
      %107 = vmatprep.subr.bf16.mxu0 0
      %108 = vmatpush1.bf16.msra.mxu0 %v87
      %109 = vmatprep.subr.bf16.mxu0 0
      %110 = vmatpush1.bf16.msra.mxu0 %v88
      %111 = vmatprep.subr.bf16.mxu0 0
      %112 = vmatpush1.bf16.msra.mxu0 %v89
      %113 = vmatprep.subr.bf16.mxu0 0
      %114 = vmatpush1.bf16.msra.mxu0 %v90
      %115 = vmatprep.subr.bf16.mxu0 0
      %116 = vmatpush1.bf16.msra.mxu0 0
      %117 = vmatprep.subr.bf16.mxu0 0
      %118 = vmatpush1.bf16.msra.mxu0 0
      %119 = vmatprep.subr.bf16.mxu0 0
      %120 = vmatpush1.bf16.msra.mxu0 0
      %121 = vmatprep.subr.bf16.mxu0 0
      %122 = vmatpush1.bf16.msra.mxu0 0
      %123 = vmatprep.subr.bf16.mxu0 0
      %124 = vmatpush1.bf16.msra.mxu0 0
      %125 = vmatprep.subr.bf16.mxu0 0
      %126 = vmatpush1.bf16.msra.mxu0 0
      %127 = vmatprep.subr.bf16.mxu0 0
      %128 = vmatpush1.bf16.msra.mxu0 0
      %129 = vmatprep.subr.bf16.mxu0 0
      %130 = vmatpush1.bf16.msra.mxu0 0
      %131 = vmatprep.mubr.bf16.mxu0 0
      %132 = vmatmul.mubr.bf16.gmra.mrb[0].mxu0 %v27
      %v133 = vpop.f32.mrb[0].mxu0
      %v134 = vadd.f32 %v49, %v133
      %v135 = vpop.f32.mrb[0].mxu0
      %v136 = vpop.f32.mrb[0].mxu0
      %v137 = vpop.f32.mrb[0].mxu0
      %138 = vdwg.mxu0
      %v139 = vsub.f32 0.0, %v134
      %v140 = vmul.f32 %v139, 1.442695
      %v141 = vpow.pop %v140
      %v142 = vadd.f32 %v141, 1.0
      %v143 = vrcp.pop %v142
      %v144 = vmul.f32 1.0, %v143
      %v145 = vmul.f32 %v134, %v144
      %v146 = vmul.f32 %v145, %v145
      %vm147 = vcmask 1041408
      %v148 = vsel %vm147, %v146, 0.0
      %149 = vadd.xlane.f32.xlu0 %v148
      %v150 = vpop.xlane.xlu0 %149
      %v151 = vmax.f32 %v150, 1e-24
      %v152 = vrsqrt.pop %v151
      %v153 = vmul.f32 %v145, %v152
      %154 = vst [vmem:[#allocation5] sm:$0x3] %v153
      %v155 = vpack.c.bf16 %v153, %v153
      %156 = vst [vmem:[#allocation2] sm:$0x1] %v155
    $region21: #{effnet_landmark.3} parent=1 // pred_fallthru
      _
    %v157 = vld [vmem:[#allocation2] sm:$0x1]
    %v158 = vld [vmem:[%s3] sm:$0xf]
    %v159 = vld [vmem:[%s3 + $0x4] sm:$0xf]
    %v160 = vld [vmem:[%s3 + $0x8] sm:$0xf]
    %v161 = vld [vmem:[%s3 + $0xc] sm:$0xf]
    %v162 = vld [vmem:[%s3 + $0x10] sm:$0xf]
    %v163 = vld [vmem:[%s3 + $0x14] sm:$0xf]
    %v164 = vld [vmem:[%s3 + $0x18] sm:$0xf]
    %v165 = vld [vmem:[%s3 + $0x1c] sm:$0xf]
    %v166 = vld [vmem:[%s3 + $0x20] sm:$0xf]
    %v167 = vld [vmem:[%s3 + $0x24] sm:$0xf]
    %v168 = vld [vmem:[%s3 + $0x28] sm:$0xf]
    %v169 = vld [vmem:[%s3 + $0x2c] sm:$0xf]
    %v170 = vld [vmem:[%s3 + $0x30] sm:$0xf]
    %v171 = vld [vmem:[%s3 + $0x34] sm:$0xf]
    %v172 = vld [vmem:[%s3 + $0x38] sm:$0xf]
    %v173 = vld [vmem:[%s3 + $0x3c] sm:$0xf]
    %v190 = vunpack.c.l.b16 %v158
    %v191 = vunpack.c.l.b16 %v159
    %v192 = vunpack.c.l.b16 %v160
    %v193 = vunpack.c.l.b16 %v161
    %v194 = vunpack.c.l.b16 %v162
    %v195 = vunpack.c.l.b16 %v163
    %v196 = vunpack.c.l.b16 %v164
    %v197 = vunpack.c.l.b16 %v165
    %v198 = vunpack.c.l.b16 %v166
    %v199 = vunpack.c.l.b16 %v167
    %v200 = vunpack.c.l.b16 %v168
    %v201 = vunpack.c.l.b16 %v169
    %v202 = vunpack.c.l.b16 %v170
    %v203 = vunpack.c.l.b16 %v171
    %v204 = vunpack.c.l.b16 %v172
    %v205 = vunpack.c.l.b16 %v173
    %v206 = vpack.c.b16 %v191, %v190
    %v207 = vpack.c.b16 %v193, %v192
    %v208 = vpack.c.b16 %v195, %v194
    %v209 = vpack.c.b16 %v197, %v196
    %v210 = vpack.c.b16 %v199, %v198
    %v211 = vpack.c.b16 %v201, %v200
    %v212 = vpack.c.b16 %v203, %v202
    %v213 = vpack.c.b16 %v205, %v204
    %222 = vmatprep.subr.bf16.mxu0 0
    %223 = vmatpush1.bf16.msra.mxu0 %v206
    %224 = vmatprep.subr.bf16.mxu0 0
    %225 = vmatpush1.bf16.msra.mxu0 %v207
    %226 = vmatprep.subr.bf16.mxu0 0
    %227 = vmatpush1.bf16.msra.mxu0 %v208
    %228 = vmatprep.subr.bf16.mxu0 0
    %229 = vmatpush1.bf16.msra.mxu0 %v209
    %230 = vmatprep.subr.bf16.mxu0 0
    %231 = vmatpush1.bf16.msra.mxu0 %v210
    %232 = vmatprep.subr.bf16.mxu0 0
    %233 = vmatpush1.bf16.msra.mxu0 %v211
    %234 = vmatprep.subr.bf16.mxu0 0
    %235 = vmatpush1.bf16.msra.mxu0 %v212
    %236 = vmatprep.subr.bf16.mxu0 0
    %237 = vmatpush1.bf16.msra.mxu0 %v213
    %238 = vmatprep.subr.bf16.mxu0 0
    %239 = vmatpush1.bf16.msra.mxu0 0
    %240 = vmatprep.subr.bf16.mxu0 0
    %241 = vmatpush1.bf16.msra.mxu0 0
    %242 = vmatprep.subr.bf16.mxu0 0
    %243 = vmatpush1.bf16.msra.mxu0 0
    %244 = vmatprep.subr.bf16.mxu0 0
    %245 = vmatpush1.bf16.msra.mxu0 0
    %246 = vmatprep.subr.bf16.mxu0 0
    %247 = vmatpush1.bf16.msra.mxu0 0
    %248 = vmatprep.subr.bf16.mxu0 0
    %249 = vmatpush1.bf16.msra.mxu0 0
    %250 = vmatprep.subr.bf16.mxu0 0
    %251 = vmatpush1.bf16.msra.mxu0 0
    %252 = vmatprep.subr.bf16.mxu0 0
    %253 = vmatpush1.bf16.msra.mxu0 0
    %254 = vmatprep.mubr.bf16.mxu0 0
    %255 = vmatmul.mubr.bf16.gmra.mrb[0].mxu0 %v157
    %v256 = vpop.f32.mrb[0].mxu0
    %v257 = vadd.f32 0.0, %v256
    %v258 = vpop.f32.mrb[0].mxu0
    %v259 = vpop.f32.mrb[0].mxu0
    %v260 = vpop.f32.mrb[0].mxu0
    %261 = vdwg.mxu0
    %s262 = scalar_lea.vmem %s3, 64
    %v263 = vld [vmem:[%s262] sm:$0xf]
    %v264 = vld [vmem:[%s262 + $0x4] sm:$0xf]
    %v265 = vld [vmem:[%s262 + $0x8] sm:$0xf]
    %v266 = vld [vmem:[%s262 + $0xc] sm:$0xf]
    %v267 = vld [vmem:[%s262 + $0x10] sm:$0xf]
    %v268 = vld [vmem:[%s262 + $0x14] sm:$0xf]
    %v269 = vld [vmem:[%s262 + $0x18] sm:$0xf]
    %v270 = vld [vmem:[%s262 + $0x1c] sm:$0xf]
    %v271 = vld [vmem:[%s262 + $0x20] sm:$0xf]
    %v272 = vld [vmem:[%s262 + $0x24] sm:$0xf]
    %v273 = vld [vmem:[%s262 + $0x28] sm:$0xf]
    %v274 = vld [vmem:[%s262 + $0x2c] sm:$0xf]
    %v275 = vld [vmem:[%s262 + $0x30] sm:$0xf]
    %v276 = vld [vmem:[%s262 + $0x34] sm:$0xf]
    %v277 = vld [vmem:[%s262 + $0x38] sm:$0xf]
    %v278 = vld [vmem:[%s262 + $0x3c] sm:$0xf]
    %v295 = vunpack.c.l.b16 %v263
    %v296 = vunpack.c.l.b16 %v264
    %v297 = vunpack.c.l.b16 %v265
    %v298 = vunpack.c.l.b16 %v266
    %v299 = vunpack.c.l.b16 %v267
    %v300 = vunpack.c.l.b16 %v268
    %v301 = vunpack.c.l.b16 %v269
    %v302 = vunpack.c.l.b16 %v270
    %v303 = vunpack.c.l.b16 %v271
    %v304 = vunpack.c.l.b16 %v272
    %v305 = vunpack.c.l.b16 %v273
    %v306 = vunpack.c.l.b16 %v274
    %v307 = vunpack.c.l.b16 %v275
    %v308 = vunpack.c.l.b16 %v276
    %v309 = vunpack.c.l.b16 %v277
    %v310 = vunpack.c.l.b16 %v278
    %v311 = vpack.c.b16 %v296, %v295
    %v312 = vpack.c.b16 %v298, %v297
    %v313 = vpack.c.b16 %v300, %v299
    %v314 = vpack.c.b16 %v302, %v301
    %v315 = vpack.c.b16 %v304, %v303
    %v316 = vpack.c.b16 %v306, %v305
    %v317 = vpack.c.b16 %v308, %v307
    %v318 = vpack.c.b16 %v310, %v309
    %327 = vmatprep.subr.bf16.mxu0 0
    %328 = vmatpush1.bf16.msra.mxu0 %v311
    %329 = vmatprep.subr.bf16.mxu0 0
    %330 = vmatpush1.bf16.msra.mxu0 %v312
    %331 = vmatprep.subr.bf16.mxu0 0
    %332 = vmatpush1.bf16.msra.mxu0 %v313
    %333 = vmatprep.subr.bf16.mxu0 0
    %334 = vmatpush1.bf16.msra.mxu0 %v314
    %335 = vmatprep.subr.bf16.mxu0 0
    %336 = vmatpush1.bf16.msra.mxu0 %v315
    %337 = vmatprep.subr.bf16.mxu0 0
    %338 = vmatpush1.bf16.msra.mxu0 %v316
    %339 = vmatprep.subr.bf16.mxu0 0
    %340 = vmatpush1.bf16.msra.mxu0 %v317
    %341 = vmatprep.subr.bf16.mxu0 0
    %342 = vmatpush1.bf16.msra.mxu0 %v318
    %343 = vmatprep.subr.bf16.mxu0 0
    %344 = vmatpush1.bf16.msra.mxu0 0
    %345 = vmatprep.subr.bf16.mxu0 0
    %346 = vmatpush1.bf16.msra.mxu0 0
    %347 = vmatprep.subr.bf16.mxu0 0
    %348 = vmatpush1.bf16.msra.mxu0 0
    %349 = vmatprep.subr.bf16.mxu0 0
    %350 = vmatpush1.bf16.msra.mxu0 0
    %351 = vmatprep.subr.bf16.mxu0 0
    %352 = vmatpush1.bf16.msra.mxu0 0
    %353 = vmatprep.subr.bf16.mxu0 0
    %354 = vmatpush1.bf16.msra.mxu0 0
    %355 = vmatprep.subr.bf16.mxu0 0
    %356 = vmatpush1.bf16.msra.mxu0 0
    %357 = vmatprep.subr.bf16.mxu0 0
    %358 = vmatpush1.bf16.msra.mxu0 0
    %359 = vmatprep.mubr.bf16.mxu0 0
    %360 = vmatmul.mubr.bf16.gmra.mrb[0].mxu0 %v157
    %v361 = vpop.f32.mrb[0].mxu0
    %v362 = vadd.f32 0.0, %v361
    %v363 = vpop.f32.mrb[0].mxu0
    %v364 = vpop.f32.mrb[0].mxu0
    %v365 = vpop.f32.mrb[0].mxu0
    %366 = vdwg.mxu0
    %v367 = vmax.f32 %v257, %v362
    %s368 = scalar_lea.vmem %s3, 128
    %v369 = vld [vmem:[%s368] sm:$0xf]
    %v370 = vld [vmem:[%s368 + $0x4] sm:$0xf]
    %v371 = vld [vmem:[%s368 + $0x8] sm:$0xf]
    %v372 = vld [vmem:[%s368 + $0xc] sm:$0xf]
    %v373 = vld [vmem:[%s368 + $0x10] sm:$0xf]
    %v374 = vld [vmem:[%s368 + $0x14] sm:$0xf]
    %v375 = vld [vmem:[%s368 + $0x18] sm:$0xf]
    %v376 = vld [vmem:[%s368 + $0x1c] sm:$0xf]
    %v377 = vld [vmem:[%s368 + $0x20] sm:$0xf]
    %v378 = vld [vmem:[%s368 + $0x24] sm:$0xf]
    %v379 = vld [vmem:[%s368 + $0x28] sm:$0xf]
    %v380 = vld [vmem:[%s368 + $0x2c] sm:$0xf]
    %v381 = vld [vmem:[%s368 + $0x30] sm:$0xf]
    %v382 = vld [vmem:[%s368 + $0x34] sm:$0xf]
    %v383 = vld [vmem:[%s368 + $0x38] sm:$0xf]
    %v384 = vld [vmem:[%s368 + $0x3c] sm:$0xf]
    %v401 = vunpack.c.l.b16 %v369
    %v402 = vunpack.c.l.b16 %v370
    %v403 = vunpack.c.l.b16 %v371
    %v404 = vunpack.c.l.b16 %v372
    %v405 = vunpack.c.l.b16 %v373
    %v406 = vunpack.c.l.b16 %v374
    %v407 = vunpack.c.l.b16 %v375
    %v408 = vunpack.c.l.b16 %v376
    %v409 = vunpack.c.l.b16 %v377
    %v410 = vunpack.c.l.b16 %v378
    %v411 = vunpack.c.l.b16 %v379
    %v412 = vunpack.c.l.b16 %v380
    %v413 = vunpack.c.l.b16 %v381
    %v414 = vunpack.c.l.b16 %v382
    %v415 = vunpack.c.l.b16 %v383
    %v416 = vunpack.c.l.b16 %v384
    %v417 = vpack.c.b16 %v402, %v401
    %v418 = vpack.c.b16 %v404, %v403
    %v419 = vpack.c.b16 %v406, %v405
    %v420 = vpack.c.b16 %v408, %v407
    %v421 = vpack.c.b16 %v410, %v409
    %v422 = vpack.c.b16 %v412, %v411
    %v423 = vpack.c.b16 %v414, %v413
    %v424 = vpack.c.b16 %v416, %v415
    %433 = vmatprep.subr.bf16.mxu0 0
    %434 = vmatpush1.bf16.msra.mxu0 %v417
    %435 = vmatprep.subr.bf16.mxu0 0
    %436 = vmatpush1.bf16.msra.mxu0 %v418
    %437 = vmatprep.subr.bf16.mxu0 0
    %438 = vmatpush1.bf16.msra.mxu0 %v419
    %439 = vmatprep.subr.bf16.mxu0 0
    %440 = vmatpush1.bf16.msra.mxu0 %v420
    %441 = vmatprep.subr.bf16.mxu0 0
    %442 = vmatpush1.bf16.msra.mxu0 %v421
    %443 = vmatprep.subr.bf16.mxu0 0
    %444 = vmatpush1.bf16.msra.mxu0 %v422
    %445 = vmatprep.subr.bf16.mxu0 0
    %446 = vmatpush1.bf16.msra.mxu0 %v423
    %447 = vmatprep.subr.bf16.mxu0 0
    %448 = vmatpush1.bf16.msra.mxu0 %v424
    %449 = vmatprep.subr.bf16.mxu0 0
    %450 = vmatpush1.bf16.msra.mxu0 0
    %451 = vmatprep.subr.bf16.mxu0 0
    %452 = vmatpush1.bf16.msra.mxu0 0
    %453 = vmatprep.subr.bf16.mxu0 0
    %454 = vmatpush1.bf16.msra.mxu0 0
    %455 = vmatprep.subr.bf16.mxu0 0
    %456 = vmatpush1.bf16.msra.mxu0 0
    %457 = vmatprep.subr.bf16.mxu0 0
    %458 = vmatpush1.bf16.msra.mxu0 0
    %459 = vmatprep.subr.bf16.mxu0 0
    %460 = vmatpush1.bf16.msra.mxu0 0
    %461 = vmatprep.subr.bf16.mxu0 0
    %462 = vmatpush1.bf16.msra.mxu0 0
    %463 = vmatprep.subr.bf16.mxu0 0
    %464 = vmatpush1.bf16.msra.mxu0 0
    %465 = vmatprep.mubr.bf16.mxu0 0
    %466 = vmatmul.mubr.bf16.gmra.mrb[0].mxu0 %v157
    %v467 = vpop.f32.mrb[0].mxu0
    %v468 = vadd.f32 0.0, %v467
    %v469 = vpop.f32.mrb[0].mxu0
    %v470 = vpop.f32.mrb[0].mxu0
    %v471 = vpop.f32.mrb[0].mxu0
    %472 = vdwg.mxu0
    %v473 = vmax.f32 %v367, %v468
    %474 = vst [vmem:[#allocation3] sm:$0x3] %v473
    // Predicated region
    $region22: #{effnet_landmark.3} parent=1 // pred_check
      _
    $region23: #{effnet_landmark.3} parent=1 // pred_check_branch
      %476 = sbr.rel (0) target = $region25
    $region24: #{effnet_landmark.3} parent=1 // pred_region
      %s478 = ssub.s32 32, 32
      %479 = vsyncadd [#allocation4], %s478
      %s481 = sshll.u32 [#allocation3], 4
      %s482 = int_to_ptr.vmem [resolvable:$true] %s481
      %484 = dma.vmem_to_hbm [thread:$0]  %s482, 32, %s4, [#allocation4]
    $region25: #{effnet_landmark.3} parent=1 // pred_fallthru
      _
    // Predicated region
    $region26: #{effnet_landmark.3} parent=1 // pred_check
      _
    $region27: #{effnet_landmark.3} parent=1 // pred_check_branch
      %486 = sbr.rel (0) target = $region29
    $region28: #{effnet_landmark.3} parent=1 // pred_region
      %s488 = ssub.s32 32, 32
      %489 = vsyncadd [#allocation6], %s488
      %s491 = sshll.u32 [#allocation5], 4
      %s492 = int_to_ptr.vmem [resolvable:$true] %s491
      %494 = dma.vmem_to_hbm [thread:$0]  %s492, 32, %s5, [#allocation6]
    $region29: #{effnet_landmark.3} parent=1 // pred_fallthru
      _
    // Predicated region
    $region30: #{effnet_landmark.3} parent=1 // pred_check
      _
    $region31: #{effnet_landmark.3} parent=1 // pred_check_branch
      %496 = sbr.rel (0) target = $region33
    $region32: #{effnet_landmark.3} parent=1 // pred_region
      %497 = dma.done [#allocation4], 32
    $region33: #{effnet_landmark.3} parent=1 // pred_fallthru
      _
    // Predicated region
    $region34: #{effnet_landmark.3} parent=1 // pred_check
      _
    $region35: #{effnet_landmark.3} parent=1 // pred_check_branch
      %499 = sbr.rel (0) target = $region37
    $region36: #{effnet_landmark.3} parent=1 // pred_region
      %500 = dma.done [#allocation6], 32
    $region37: #{effnet_landmark.3} parent=1 // pred_fallthru
      _
    %501 = vsyncpa [#allocation4], 1
    %502 = vsyncpa [#allocation6], 1

</llo_original>
